<compile_context>
chip_gen: v7x
topology: tpu7x:2x2x1
jax: 0.10.0
libtpu: 0.0.40
codegen_flags: <defaults>
</compile_context>

<pallas_src>
import functools

import jax
import jax.numpy as jnp
import numpy as np
from jax.experimental import pallas as pl
from jax.experimental.pallas import tpu as pltpu

EPS = 1e-5


# ------------------------------ in-kernel helpers ------------------------------

def _lane_shift(x, s):
    """out[..., f] = x[..., (f + s) % L]: circular shift along the lane axis.

    Wrapped lanes always land on image-boundary positions that the caller masks
    to zero, so the circular wrap is harmless even with several images packed
    per block (any wrap crosses a row or top/bottom boundary)."""
    return x if s == 0 else jnp.roll(x, -s, axis=-1)


def _conv3x3_flat(x, w_ref, idx_ref, H, W):
    """3x3 'same' convolution on lane-flattened activations.

    x:       (Cin, L) f32, L = Bt*H*W, lane index = img*H*W + h*W + w.
    w_ref:   (9, Cout, Cin) ref (bf16), tap t = kh*3 + kw  (dh = kh-1, dw = kw-1).
    idx_ref: (2, L) int32, row 0 = h, row 1 = w per lane (precomputed, resident).
    Returns (Cout, L) f32: 9 shifted-tap matmuls accumulated in f32 on the MXU.
    """
    h = idx_ref[0:1, :]                              # (1, L)
    w = idx_ref[1:2, :]                              # (1, L)
    not_top, not_bot = h >= 1, h <= H - 2
    not_lft, not_rgt = w >= 1, w <= W - 2

    acc = None
    t = 0
    for dh in (-1, 0, 1):
        for dw in (-1, 0, 1):
            tap = _lane_shift(x, dh * W + dw)
            mask = None
            for need, cond in ((dh == -1, not_top), (dh == 1, not_bot),
                               (dw == -1, not_lft), (dw == 1, not_rgt)):
                if need:
                    mask = cond if mask is None else mask & cond
            if mask is not None:
                tap = jnp.where(mask, tap, 0.0)      # zero-pad halo via masks
            # bf16 operands -> full-rate MXU; f32 accumulation.
            d = jnp.dot(w_ref[t], tap.astype(w_ref.dtype),
                        preferred_element_type=jnp.float32)
            acc = d if acc is None else acc + d
            t += 1
    return acc


def _emit_partial_stats(st_ref, y):
    """y: (Cout, L) f32 -> per-block per-channel (sum, sum of squares)."""
    st_ref[0, :, 0:1] = jnp.sum(y, axis=1, keepdims=True)
    st_ref[0, :, 1:2] = jnp.sum(y * y, axis=1, keepdims=True)


# ---------------------------------- kernels ----------------------------------

def conv1_stats_kernel(x_ref, w_ref, idx_ref, y_ref, st_ref, *, H, W):
    """y1 = conv1(x); emit per-block BN partial sums of y1."""
    y = _conv3x3_flat(x_ref[...], w_ref, idx_ref, H, W)
    y_ref[...] = y
    _emit_partial_stats(st_ref, y)


def bn_relu_conv_stats_kernel(y1_ref, s_ref, b_ref, w_ref, idx_ref, y_ref, st_ref,
                              *, H, W):
    """h1 = relu(y1*scale + shift) kept only in VMEM; y2 = conv2(h1); stats."""
    h1 = jnp.maximum(y1_ref[...] * s_ref[...] + b_ref[...], 0.0)   # f32 elementwise
    y = _conv3x3_flat(h1, w_ref, idx_ref, H, W)
    y_ref[...] = y
    _emit_partial_stats(st_ref, y)


# --------------------------------- wrapper ---------------------------------

def _pick_batch_tile(n, hw):
    """Images packed per grid step along the lane axis.

    bt must divide n and bt*hw must be lane-aligned (multiple of 128) unless the
    whole batch is one step.  Prefer >=1024 lanes per step (amortize per-step
    overhead, widen the MXU N dim) while keeping >=2 steps for pipelining /
    megacore when the batch allows."""
    cands = [bt for bt in range(1, n + 1)
             if n % bt == 0 and ((bt * hw) % 128 == 0 or bt == n)]
    for bt in cands:
        if bt * hw >= 1024 and n // bt >= 2:
            return bt
    multi = [bt for bt in cands if n // bt >= 2]
    return multi[-1] if multi else cands[-1]


def _vmem_limit_bytes(block_bytes):
    # in+out activation blocks, double-buffered, with headroom; clamp to
    # [32 MiB, 48 MiB] so the same budget also fits v7x's 64 MiB/TC.
    return int(min(max(8 * block_bytes, 32 * 2**20), 48 * 2**20))


def residual_block_pallas(x_nchw, params):
    """ResidualBlock forward (stride=1, downsample=None). x_nchw: (N, C, H, W)."""
    x_nchw = x_nchw.astype(jnp.float32)
    N, C, H, W = x_nchw.shape
    HW = H * W
    w1, w2 = params["w1"], params["w2"]              # (9, Cout, Cin), bf16 taps
    Cout = w1.shape[1]
    assert Cout == C, "identity residual requires in_channels == out_channels"

    # Channel-major, lane-dense flat layout: (C, N*H*W), lane = img*HW + h*W + w.
    xT = jnp.transpose(x_nchw, (1, 0, 2, 3)).reshape(C, N * HW)

    bt = _pick_batch_tile(N, HW)
    G = N // bt
    Lb = bt * HW
    Ltot = N * HW
    count = float(N * HW)

    # Static per-lane (h, w) coordinates (periodic with HW, so one block serves
    # every grid step); avoids in-kernel integer div/mod.
    f = np.arange(Lb, dtype=np.int64) % HW
    hw_idx = jnp.asarray(np.stack([f // W, f % W]).astype(np.int32))   # (2, Lb)

    cp = pltpu.CompilerParams(
        dimension_semantics=("parallel",),            # batch-tile axis -> megacore
        vmem_limit_bytes=_vmem_limit_bytes(C * Lb * 4),
    )

    act_spec = pl.BlockSpec((C, Lb), lambda i: (0, i))       # lane-dense blocks
    w_spec = pl.BlockSpec((9, C, C), lambda i: (0, 0, 0))    # resident weights
    vec_spec = pl.BlockSpec((C, 1), lambda i: (0, 0))        # folded BN scale/shift
    idx_spec = pl.BlockSpec((2, Lb), lambda i: (0, 0))       # resident (h, w) coords
    st_spec = pl.BlockSpec((1, C, 2), lambda i: (i, 0, 0))   # per-block partial stats
    act_shape = jax.ShapeDtypeStruct((C, Ltot), jnp.float32)
    st_shape = jax.ShapeDtypeStruct((G, C, 2), jnp.float32)

    def stats_to_affine(st, gamma, beta):
        s = jnp.sum(st, axis=0)                      # (C, 2): [sum, sumsq] over batch
        mean = s[:, 0] / count
        # NOTE: single-pass E[x^2]-E[x]^2 in f32 (fine for normalized activations).
        var = s[:, 1] / count - mean * mean          # biased var (PyTorch train mode)
        scale = gamma * jax.lax.rsqrt(var + EPS)     # BN folded to one scale/shift
        shift = beta - mean * scale
        return scale.reshape(C, 1), shift.reshape(C, 1)

    # ---- Stage A: conv1 + per-block BN partial sums -----------------------------
    y1, st1 = pl.pallas_call(
        functools.partial(conv1_stats_kernel, H=H, W=W),
        grid=(G,),
        in_specs=[act_spec, w_spec, idx_spec],
        out_specs=(act_spec, st_spec),
        out_shape=(act_shape, st_shape),
        compiler_params=cp,
    )(xT, w1, hw_idx)
    scale1, shift1 = stats_to_affine(st1, params["g1"], params["b1"])

    # ---- Stage B: folded BN1 + ReLU + conv2 + partial sums (h1 stays in VMEM) ---
    y2, st2 = pl.pallas_call(
        functools.partial(bn_relu_conv_stats_kernel, H=H, W=W),
        grid=(G,),
        in_specs=[act_spec, vec_spec, vec_spec, w_spec, idx_spec],
        out_specs=(act_spec, st_spec),
        out_shape=(act_shape, st_shape),
        compiler_params=cp,
    )(y1, scale1, shift1, w2, hw_idx)
    scale2, shift2 = stats_to_affine(st2, params["g2"], params["b2"])

    # ---- Stage C: folded BN2 + residual add + ReLU -------------------------------
    # Left to XLA (per perf review): trivially fusible elementwise that fuses with
    # the layout transform back to NCHW in a single HBM pass.
    out_flat = jnp.maximum(y2 * scale2 + shift2 + xT, 0.0)
    return out_flat.reshape(C, N, H, W).transpose(1, 0, 2, 3)


def pack_w(w_oihw, dtype=jnp.bfloat16):
    """(Cout, Cin, 3, 3) -> (9, Cout, Cin), tap t = kh*3 + kw; bf16 for the MXU."""
    Cout, Cin = w_oihw.shape[0], w_oihw.shape[1]
    return jnp.transpose(w_oihw, (2, 3, 0, 1)).reshape(9, Cout, Cin).astype(dtype)


# -------------------- pure-JAX reference (for verification) --------------------

def residual_block_ref(x_nchw, raw):
    def conv(x, w_oihw):
        return jax.lax.conv_general_dilated(
            x, w_oihw, window_strides=(1, 1), padding=((1, 1), (1, 1)),
            dimension_numbers=("NCHW", "OIHW", "NCHW"))

    def bn(x, g, b):
        mean = x.mean(axis=(0, 2, 3), keepdims=True)
        var = ((x - mean) ** 2).mean(axis=(0, 2, 3), keepdims=True)
        return (x - mean) / jnp.sqrt(var + EPS) * g.reshape(1, -1, 1, 1) + b.reshape(1, -1, 1, 1)

    out = jax.nn.relu(bn(conv(x_nchw, raw["w1_oihw"]), raw["g1"], raw["b1"]))
    out = bn(conv(out, raw["w2_oihw"]), raw["g2"], raw["b2"])
    return jax.nn.relu(out + x_nchw)


if __name__ == "__main__":
    # Shapes consistent with ResidualBlock(in_channels=4, out_channels=4, stride=1)
    N, C, H, W = 2, 4, 16, 16
    key = jax.random.PRNGKey(0)
    k_x, k_w1, k_w2 = jax.random.split(key, 3)

    x = jax.random.normal(k_x, (N, C, H, W), jnp.float32)

    # Deterministic parameter init (conv weights ~ N(0, 0.1); BN gamma=1, beta=0
    # matches a fresh nn.BatchNorm2d).
    w1_oihw = 0.1 * jax.random.normal(k_w1, (C, C, 3, 3), jnp.float32)
    w2_oihw = 0.1 * jax.random.normal(k_w2, (C, C, 3, 3), jnp.float32)
    g1 = jnp.ones((C,), jnp.float32)
    b1 = jnp.zeros((C,), jnp.float32)
    g2 = jnp.ones((C,), jnp.float32)
    b2 = jnp.zeros((C,), jnp.float32)

    params = {"w1": pack_w(w1_oihw), "g1": g1, "b1": b1,
              "w2": pack_w(w2_oihw), "g2": g2, "b2": b2}
    raw = {"w1_oihw": w1_oihw, "g1": g1, "b1": b1,
           "w2_oihw": w2_oihw, "g2": g2, "b2": b2}

    fwd = jax.jit(residual_block_pallas)
    out = jax.block_until_ready(fwd(x, params))
    ref = jax.block_until_ready(residual_block_ref(x, raw))

    assert out.shape == (N, C, H, W)
    # bf16 MXU operands (per perf review) vs. f32 reference -> bf16-level tolerance.
    np.testing.assert_allclose(np.asarray(out), np.asarray(ref), atol=2e-2, rtol=2e-2)
    print("KERNEL_OK")
</pallas_src>

<mosaic_0001>
module attributes {stable_mosaic.version = 11 : i64} {
  func.func @conv1_stats_kernel(%arg0: i32, %arg1: memref<4x256xf32, #tpu.memory_space<vmem>>, %arg2: memref<9x4x4xbf16, #tpu.memory_space<vmem>>, %arg3: memref<2x256xi32, #tpu.memory_space<vmem>>, %arg4: memref<4x256xf32, #tpu.memory_space<vmem>>, %arg5: memref<1x4x2xf32, #tpu.memory_space<vmem>>) attributes {dimension_semantics = [#tpu.dimension_semantics<parallel>], iteration_bounds = array<i64: 2>, scalar_prefetch = 0 : i64, scratch_operands = 0 : i64, tpu.core_type = #tpu.core_type<tc>, window_params = [{transform_indices = @transform_0, window_bounds = array<i64: 4, 256>}, {pipeline_mode = #tpu.pipeline_mode<synchronous>, transform_indices = @transform_1, window_bounds = array<i64: 9, 4, 4>}, {pipeline_mode = #tpu.pipeline_mode<synchronous>, transform_indices = @transform_2, window_bounds = array<i64: 2, 256>}, {transform_indices = @transform_3, window_bounds = array<i64: 4, 256>}, {transform_indices = @transform_4, window_bounds = array<i64: 1, 4, 2>}]} {
    %c0 = arith.constant 0 : index
    %c0_0 = arith.constant 0 : index
    %0 = vector.load %arg1[%c0, %c0_0] : memref<4x256xf32, #tpu.memory_space<vmem>>, vector<4x256xf32>
    %c0_1 = arith.constant 0 : index
    %c0_2 = arith.constant 0 : index
    %1 = vector.load %arg3[%c0_1, %c0_2] : memref<2x256xi32, #tpu.memory_space<vmem>>, vector<1x256xi32>
    %c1 = arith.constant 1 : index
    %c0_3 = arith.constant 0 : index
    %2 = vector.load %arg3[%c1, %c0_3] : memref<2x256xi32, #tpu.memory_space<vmem>>, vector<1x256xi32>
    %c1_i32 = arith.constant 1 : i32
    %3 = vector.broadcast %c1_i32 : i32 to vector<1x256xi32>
    %4 = arith.cmpi sge, %1, %3 : vector<1x256xi32>
    %c14_i32 = arith.constant 14 : i32
    %5 = vector.broadcast %c14_i32 : i32 to vector<1x256xi32>
    %6 = arith.cmpi sle, %1, %5 : vector<1x256xi32>
    %c1_i32_4 = arith.constant 1 : i32
    %7 = vector.broadcast %c1_i32_4 : i32 to vector<1x256xi32>
    %8 = arith.cmpi sge, %2, %7 : vector<1x256xi32>
    %c14_i32_5 = arith.constant 14 : i32
    %9 = vector.broadcast %c14_i32_5 : i32 to vector<1x256xi32>
    %10 = arith.cmpi sle, %2, %9 : vector<1x256xi32>
    %11 = vector.extract_strided_slice %0 {offsets = [0, 239], sizes = [4, 17], strides = [1, 1]} : vector<4x256xf32> to vector<4x17xf32>
    %12 = vector.extract_strided_slice %0 {offsets = [0, 0], sizes = [4, 239], strides = [1, 1]} : vector<4x256xf32> to vector<4x239xf32>
    %13 = tpu.concatenate %11, %12 in 1 : vector<4x17xf32>, vector<4x239xf32> -> vector<4x256xf32>
    %14 = arith.andi %4, %8 : vector<1x256xi1>
    %cst = arith.constant 0.000000e+00 : f32
    %15 = vector.shape_cast %14 : vector<1x256xi1> to vector<1x256xi1>
    %16 = vector.broadcast %15 : vector<1x256xi1> to vector<4x256xi1>
    %17 = vector.broadcast %cst : f32 to vector<4x256xf32>
    %18 = arith.select %16, %13, %17 : vector<4x256xi1>, vector<4x256xf32>
    %c0_6 = arith.constant 0 : index
    %c0_7 = arith.constant 0 : index
    %c0_8 = arith.constant 0 : index
    %19 = vector.load %arg2[%c0_6, %c0_7, %c0_8] : memref<9x4x4xbf16, #tpu.memory_space<vmem>>, vector<1x4x4xbf16>
    %20 = vector.shape_cast %19 : vector<1x4x4xbf16> to vector<4x4xbf16>
    %21 = arith.truncf %18 : vector<4x256xf32> to vector<4x256xbf16>
    %cst_9 = arith.constant dense<0.000000e+00> : vector<4x256xf32>
    %22 = tpu.matmul %20, %21, %cst_9 {dimension_numbers = #tpu.dot_dimension_numbers<[1], [0], [0], [1], [0, 0, 1, 1], [], []>} : vector<4x4xbf16>, vector<4x256xbf16>, vector<4x256xf32> -> vector<4x256xf32>
    %23 = vector.extract_strided_slice %0 {offsets = [0, 240], sizes = [4, 16], strides = [1, 1]} : vector<4x256xf32> to vector<4x16xf32>
    %24 = vector.extract_strided_slice %0 {offsets = [0, 0], sizes = [4, 240], strides = [1, 1]} : vector<4x256xf32> to vector<4x240xf32>
    %25 = tpu.concatenate %23, %24 in 1 : vector<4x16xf32>, vector<4x240xf32> -> vector<4x256xf32>
    %cst_10 = arith.constant 0.000000e+00 : f32
    %26 = vector.shape_cast %4 : vector<1x256xi1> to vector<1x256xi1>
    %27 = vector.broadcast %26 : vector<1x256xi1> to vector<4x256xi1>
    %28 = vector.broadcast %cst_10 : f32 to vector<4x256xf32>
    %29 = arith.select %27, %25, %28 : vector<4x256xi1>, vector<4x256xf32>
    %c1_11 = arith.constant 1 : index
    %c0_12 = arith.constant 0 : index
    %c0_13 = arith.constant 0 : index
    %30 = vector.load %arg2[%c1_11, %c0_12, %c0_13] : memref<9x4x4xbf16, #tpu.memory_space<vmem>>, vector<1x4x4xbf16>
    %31 = vector.shape_cast %30 : vector<1x4x4xbf16> to vector<4x4xbf16>
    %32 = arith.truncf %29 : vector<4x256xf32> to vector<4x256xbf16>
    %cst_14 = arith.constant dense<0.000000e+00> : vector<4x256xf32>
    %33 = tpu.matmul %31, %32, %cst_14 {dimension_numbers = #tpu.dot_dimension_numbers<[1], [0], [0], [1], [0, 0, 1, 1], [], []>} : vector<4x4xbf16>, vector<4x256xbf16>, vector<4x256xf32> -> vector<4x256xf32>
    %34 = arith.addf %22, %33 : vector<4x256xf32>
    %35 = vector.extract_strided_slice %0 {offsets = [0, 241], sizes = [4, 15], strides = [1, 1]} : vector<4x256xf32> to vector<4x15xf32>
    %36 = vector.extract_strided_slice %0 {offsets = [0, 0], sizes = [4, 241], strides = [1, 1]} : vector<4x256xf32> to vector<4x241xf32>
    %37 = tpu.concatenate %35, %36 in 1 : vector<4x15xf32>, vector<4x241xf32> -> vector<4x256xf32>
    %38 = arith.andi %4, %10 : vector<1x256xi1>
    %cst_15 = arith.constant 0.000000e+00 : f32
    %39 = vector.shape_cast %38 : vector<1x256xi1> to vector<1x256xi1>
    %40 = vector.broadcast %39 : vector<1x256xi1> to vector<4x256xi1>
    %41 = vector.broadcast %cst_15 : f32 to vector<4x256xf32>
    %42 = arith.select %40, %37, %41 : vector<4x256xi1>, vector<4x256xf32>
    %c2 = arith.constant 2 : index
    %c0_16 = arith.constant 0 : index
    %c0_17 = arith.constant 0 : index
    %43 = vector.load %arg2[%c2, %c0_16, %c0_17] : memref<9x4x4xbf16, #tpu.memory_space<vmem>>, vector<1x4x4xbf16>
    %44 = vector.shape_cast %43 : vector<1x4x4xbf16> to vector<4x4xbf16>
    %45 = arith.truncf %42 : vector<4x256xf32> to vector<4x256xbf16>
    %cst_18 = arith.constant dense<0.000000e+00> : vector<4x256xf32>
    %46 = tpu.matmul %44, %45, %cst_18 {dimension_numbers = #tpu.dot_dimension_numbers<[1], [0], [0], [1], [0, 0, 1, 1], [], []>} : vector<4x4xbf16>, vector<4x256xbf16>, vector<4x256xf32> -> vector<4x256xf32>
    %47 = arith.addf %34, %46 : vector<4x256xf32>
    %48 = vector.extract_strided_slice %0 {offsets = [0, 255], sizes = [4, 1], strides = [1, 1]} : vector<4x256xf32> to vector<4x1xf32>
    %49 = vector.extract_strided_slice %0 {offsets = [0, 0], sizes = [4, 255], strides = [1, 1]} : vector<4x256xf32> to vector<4x255xf32>
    %50 = tpu.concatenate %48, %49 in 1 : vector<4x1xf32>, vector<4x255xf32> -> vector<4x256xf32>
    %cst_19 = arith.constant 0.000000e+00 : f32
    %51 = vector.shape_cast %8 : vector<1x256xi1> to vector<1x256xi1>
    %52 = vector.broadcast %51 : vector<1x256xi1> to vector<4x256xi1>
    %53 = vector.broadcast %cst_19 : f32 to vector<4x256xf32>
    %54 = arith.select %52, %50, %53 : vector<4x256xi1>, vector<4x256xf32>
    %c3 = arith.constant 3 : index
    %c0_20 = arith.constant 0 : index
    %c0_21 = arith.constant 0 : index
    %55 = vector.load %arg2[%c3, %c0_20, %c0_21] : memref<9x4x4xbf16, #tpu.memory_space<vmem>>, vector<1x4x4xbf16>
    %56 = vector.shape_cast %55 : vector<1x4x4xbf16> to vector<4x4xbf16>
    %57 = arith.truncf %54 : vector<4x256xf32> to vector<4x256xbf16>
    %cst_22 = arith.constant dense<0.000000e+00> : vector<4x256xf32>
    %58 = tpu.matmul %56, %57, %cst_22 {dimension_numbers = #tpu.dot_dimension_numbers<[1], [0], [0], [1], [0, 0, 1, 1], [], []>} : vector<4x4xbf16>, vector<4x256xbf16>, vector<4x256xf32> -> vector<4x256xf32>
    %59 = arith.addf %47, %58 : vector<4x256xf32>
    %c4 = arith.constant 4 : index
    %c0_23 = arith.constant 0 : index
    %c0_24 = arith.constant 0 : index
    %60 = vector.load %arg2[%c4, %c0_23, %c0_24] : memref<9x4x4xbf16, #tpu.memory_space<vmem>>, vector<1x4x4xbf16>
    %61 = vector.shape_cast %60 : vector<1x4x4xbf16> to vector<4x4xbf16>
    %62 = arith.truncf %0 : vector<4x256xf32> to vector<4x256xbf16>
    %cst_25 = arith.constant dense<0.000000e+00> : vector<4x256xf32>
    %63 = tpu.matmul %61, %62, %cst_25 {dimension_numbers = #tpu.dot_dimension_numbers<[1], [0], [0], [1], [0, 0, 1, 1], [], []>} : vector<4x4xbf16>, vector<4x256xbf16>, vector<4x256xf32> -> vector<4x256xf32>
    %64 = arith.addf %59, %63 : vector<4x256xf32>
    %65 = vector.extract_strided_slice %0 {offsets = [0, 1], sizes = [4, 255], strides = [1, 1]} : vector<4x256xf32> to vector<4x255xf32>
    %66 = vector.extract_strided_slice %0 {offsets = [0, 0], sizes = [4, 1], strides = [1, 1]} : vector<4x256xf32> to vector<4x1xf32>
    %67 = tpu.concatenate %65, %66 in 1 : vector<4x255xf32>, vector<4x1xf32> -> vector<4x256xf32>
    %cst_26 = arith.constant 0.000000e+00 : f32
    %68 = vector.shape_cast %10 : vector<1x256xi1> to vector<1x256xi1>
    %69 = vector.broadcast %68 : vector<1x256xi1> to vector<4x256xi1>
    %70 = vector.broadcast %cst_26 : f32 to vector<4x256xf32>
    %71 = arith.select %69, %67, %70 : vector<4x256xi1>, vector<4x256xf32>
    %c5 = arith.constant 5 : index
    %c0_27 = arith.constant 0 : index
    %c0_28 = arith.constant 0 : index
    %72 = vector.load %arg2[%c5, %c0_27, %c0_28] : memref<9x4x4xbf16, #tpu.memory_space<vmem>>, vector<1x4x4xbf16>
    %73 = vector.shape_cast %72 : vector<1x4x4xbf16> to vector<4x4xbf16>
    %74 = arith.truncf %71 : vector<4x256xf32> to vector<4x256xbf16>
    %cst_29 = arith.constant dense<0.000000e+00> : vector<4x256xf32>
    %75 = tpu.matmul %73, %74, %cst_29 {dimension_numbers = #tpu.dot_dimension_numbers<[1], [0], [0], [1], [0, 0, 1, 1], [], []>} : vector<4x4xbf16>, vector<4x256xbf16>, vector<4x256xf32> -> vector<4x256xf32>
    %76 = arith.addf %64, %75 : vector<4x256xf32>
    %77 = vector.extract_strided_slice %0 {offsets = [0, 15], sizes = [4, 241], strides = [1, 1]} : vector<4x256xf32> to vector<4x241xf32>
    %78 = vector.extract_strided_slice %0 {offsets = [0, 0], sizes = [4, 15], strides = [1, 1]} : vector<4x256xf32> to vector<4x15xf32>
    %79 = tpu.concatenate %77, %78 in 1 : vector<4x241xf32>, vector<4x15xf32> -> vector<4x256xf32>
    %80 = arith.andi %6, %8 : vector<1x256xi1>
    %cst_30 = arith.constant 0.000000e+00 : f32
    %81 = vector.shape_cast %80 : vector<1x256xi1> to vector<1x256xi1>
    %82 = vector.broadcast %81 : vector<1x256xi1> to vector<4x256xi1>
    %83 = vector.broadcast %cst_30 : f32 to vector<4x256xf32>
    %84 = arith.select %82, %79, %83 : vector<4x256xi1>, vector<4x256xf32>
    %c6 = arith.constant 6 : index
    %c0_31 = arith.constant 0 : index
    %c0_32 = arith.constant 0 : index
    %85 = vector.load %arg2[%c6, %c0_31, %c0_32] : memref<9x4x4xbf16, #tpu.memory_space<vmem>>, vector<1x4x4xbf16>
    %86 = vector.shape_cast %85 : vector<1x4x4xbf16> to vector<4x4xbf16>
    %87 = arith.truncf %84 : vector<4x256xf32> to vector<4x256xbf16>
    %cst_33 = arith.constant dense<0.000000e+00> : vector<4x256xf32>
    %88 = tpu.matmul %86, %87, %cst_33 {dimension_numbers = #tpu.dot_dimension_numbers<[1], [0], [0], [1], [0, 0, 1, 1], [], []>} : vector<4x4xbf16>, vector<4x256xbf16>, vector<4x256xf32> -> vector<4x256xf32>
    %89 = arith.addf %76, %88 : vector<4x256xf32>
    %90 = vector.extract_strided_slice %0 {offsets = [0, 16], sizes = [4, 240], strides = [1, 1]} : vector<4x256xf32> to vector<4x240xf32>
    %91 = vector.extract_strided_slice %0 {offsets = [0, 0], sizes = [4, 16], strides = [1, 1]} : vector<4x256xf32> to vector<4x16xf32>
    %92 = tpu.concatenate %90, %91 in 1 : vector<4x240xf32>, vector<4x16xf32> -> vector<4x256xf32>
    %cst_34 = arith.constant 0.000000e+00 : f32
    %93 = vector.shape_cast %6 : vector<1x256xi1> to vector<1x256xi1>
    %94 = vector.broadcast %93 : vector<1x256xi1> to vector<4x256xi1>
    %95 = vector.broadcast %cst_34 : f32 to vector<4x256xf32>
    %96 = arith.select %94, %92, %95 : vector<4x256xi1>, vector<4x256xf32>
    %c7 = arith.constant 7 : index
    %c0_35 = arith.constant 0 : index
    %c0_36 = arith.constant 0 : index
    %97 = vector.load %arg2[%c7, %c0_35, %c0_36] : memref<9x4x4xbf16, #tpu.memory_space<vmem>>, vector<1x4x4xbf16>
    %98 = vector.shape_cast %97 : vector<1x4x4xbf16> to vector<4x4xbf16>
    %99 = arith.truncf %96 : vector<4x256xf32> to vector<4x256xbf16>
    %cst_37 = arith.constant dense<0.000000e+00> : vector<4x256xf32>
    %100 = tpu.matmul %98, %99, %cst_37 {dimension_numbers = #tpu.dot_dimension_numbers<[1], [0], [0], [1], [0, 0, 1, 1], [], []>} : vector<4x4xbf16>, vector<4x256xbf16>, vector<4x256xf32> -> vector<4x256xf32>
    %101 = arith.addf %89, %100 : vector<4x256xf32>
    %102 = vector.extract_strided_slice %0 {offsets = [0, 17], sizes = [4, 239], strides = [1, 1]} : vector<4x256xf32> to vector<4x239xf32>
    %103 = vector.extract_strided_slice %0 {offsets = [0, 0], sizes = [4, 17], strides = [1, 1]} : vector<4x256xf32> to vector<4x17xf32>
    %104 = tpu.concatenate %102, %103 in 1 : vector<4x239xf32>, vector<4x17xf32> -> vector<4x256xf32>
    %105 = arith.andi %6, %10 : vector<1x256xi1>
    %cst_38 = arith.constant 0.000000e+00 : f32
    %106 = vector.shape_cast %105 : vector<1x256xi1> to vector<1x256xi1>
    %107 = vector.broadcast %106 : vector<1x256xi1> to vector<4x256xi1>
    %108 = vector.broadcast %cst_38 : f32 to vector<4x256xf32>
    %109 = arith.select %107, %104, %108 : vector<4x256xi1>, vector<4x256xf32>
    %c8 = arith.constant 8 : index
    %c0_39 = arith.constant 0 : index
    %c0_40 = arith.constant 0 : index
    %110 = vector.load %arg2[%c8, %c0_39, %c0_40] : memref<9x4x4xbf16, #tpu.memory_space<vmem>>, vector<1x4x4xbf16>
    %111 = vector.shape_cast %110 : vector<1x4x4xbf16> to vector<4x4xbf16>
    %112 = arith.truncf %109 : vector<4x256xf32> to vector<4x256xbf16>
    %cst_41 = arith.constant dense<0.000000e+00> : vector<4x256xf32>
    %113 = tpu.matmul %111, %112, %cst_41 {dimension_numbers = #tpu.dot_dimension_numbers<[1], [0], [0], [1], [0, 0, 1, 1], [], []>} : vector<4x4xbf16>, vector<4x256xbf16>, vector<4x256xf32> -> vector<4x256xf32>
    %114 = arith.addf %101, %113 : vector<4x256xf32>
    %c0_42 = arith.constant 0 : index
    %c0_43 = arith.constant 0 : index
    %115 = vector.load %arg4[%c0_42, %c0_43] : memref<4x256xf32, #tpu.memory_space<vmem>>, vector<4x256xf32>
    tpu.vector_store %arg4[%c0_42, %c0_43], %114 {strides = array<i32>} : memref<4x256xf32, #tpu.memory_space<vmem>>, vector<4x256xf32>,
    %cst_44 = arith.constant dense<0.000000e+00> : vector<4xf32>
    %116 = vector.multi_reduction <add>, %114, %cst_44 [1] : vector<4x256xf32> to vector<4xf32>
    %117 = vector.shape_cast %116 : vector<4xf32> to vector<4x1xf32>
    %c0_45 = arith.constant 0 : index
    %c0_46 = arith.constant 0 : index
    %c0_47 = arith.constant 0 : index
    %118 = vector.load %arg5[%c0_45, %c0_46, %c0_47] : memref<1x4x2xf32, #tpu.memory_space<vmem>>, vector<1x4x1xf32>
    %119 = vector.shape_cast %118 : vector<1x4x1xf32> to vector<4x1xf32>
    %120 = vector.shape_cast %117 : vector<4x1xf32> to vector<1x4x1xf32>
    tpu.vector_store %arg5[%c0_45, %c0_46, %c0_47], %120 {strides = array<i32>} : memref<1x4x2xf32, #tpu.memory_space<vmem>>, vector<1x4x1xf32>,
    %121 = arith.mulf %114, %114 : vector<4x256xf32>
    %cst_48 = arith.constant dense<0.000000e+00> : vector<4xf32>
    %122 = vector.multi_reduction <add>, %121, %cst_48 [1] : vector<4x256xf32> to vector<4xf32>
    %123 = vector.shape_cast %122 : vector<4xf32> to vector<4x1xf32>
    %c0_49 = arith.constant 0 : index
    %c0_50 = arith.constant 0 : index
    %c1_51 = arith.constant 1 : index
    %124 = vector.load %arg5[%c0_49, %c0_50, %c1_51] : memref<1x4x2xf32, #tpu.memory_space<vmem>>, vector<1x4x1xf32>
    %125 = vector.shape_cast %124 : vector<1x4x1xf32> to vector<4x1xf32>
    %126 = vector.shape_cast %123 : vector<4x1xf32> to vector<1x4x1xf32>
    tpu.vector_store %arg5[%c0_49, %c0_50, %c1_51], %126 {strides = array<i32>} : memref<1x4x2xf32, #tpu.memory_space<vmem>>, vector<1x4x1xf32>,
    return
  }
  func.func @transform_0(%arg0: i32) -> (i32, i32) {
    %c0_i32 = arith.constant 0 : i32
    %c0_i32_0 = arith.constant 0 : i32
    return %c0_i32, %arg0 : i32, i32
  }
  func.func @transform_1(%arg0: i32) -> (i32, i32, i32) {
    %c0_i32 = arith.constant 0 : i32
    %c0_i32_0 = arith.constant 0 : i32
    %c0_i32_1 = arith.constant 0 : i32
    %c0_i32_2 = arith.constant 0 : i32
    return %c0_i32, %c0_i32_0, %c0_i32_1 : i32, i32, i32
  }
  func.func @transform_2(%arg0: i32) -> (i32, i32) {
    %c0_i32 = arith.constant 0 : i32
    %c0_i32_0 = arith.constant 0 : i32
    %c0_i32_1 = arith.constant 0 : i32
    return %c0_i32, %c0_i32_0 : i32, i32
  }
  func.func @transform_3(%arg0: i32) -> (i32, i32) {
    %c0_i32 = arith.constant 0 : i32
    %c0_i32_0 = arith.constant 0 : i32
    return %c0_i32, %arg0 : i32, i32
  }
  func.func @transform_4(%arg0: i32) -> (i32, i32, i32) {
    %c0_i32 = arith.constant 0 : i32
    %c0_i32_0 = arith.constant 0 : i32
    %c0_i32_1 = arith.constant 0 : i32
    return %arg0, %c0_i32, %c0_i32_0 : i32, i32, i32
  }
}

module attributes {stable_mosaic.version = 11 : i64} {
  func.func @bn_relu_conv_stats_kernel(%arg0: i32, %arg1: memref<4x256xf32, #tpu.memory_space<vmem>>, %arg2: memref<4x1xf32, #tpu.memory_space<vmem>>, %arg3: memref<4x1xf32, #tpu.memory_space<vmem>>, %arg4: memref<9x4x4xbf16, #tpu.memory_space<vmem>>, %arg5: memref<2x256xi32, #tpu.memory_space<vmem>>, %arg6: memref<4x256xf32, #tpu.memory_space<vmem>>, %arg7: memref<1x4x2xf32, #tpu.memory_space<vmem>>) attributes {dimension_semantics = [#tpu.dimension_semantics<parallel>], iteration_bounds = array<i64: 2>, scalar_prefetch = 0 : i64, scratch_operands = 0 : i64, tpu.core_type = #tpu.core_type<tc>, window_params = [{transform_indices = @transform_0, window_bounds = array<i64: 4, 256>}, {pipeline_mode = #tpu.pipeline_mode<synchronous>, transform_indices = @transform_1, window_bounds = array<i64: 4, 1>}, {pipeline_mode = #tpu.pipeline_mode<synchronous>, transform_indices = @transform_2, window_bounds = array<i64: 4, 1>}, {pipeline_mode = #tpu.pipeline_mode<synchronous>, transform_indices = @transform_3, window_bounds = array<i64: 9, 4, 4>}, {pipeline_mode = #tpu.pipeline_mode<synchronous>, transform_indices = @transform_4, window_bounds = array<i64: 2, 256>}, {transform_indices = @transform_5, window_bounds = array<i64: 4, 256>}, {transform_indices = @transform_6, window_bounds = array<i64: 1, 4, 2>}]} {
    %c0 = arith.constant 0 : index
    %c0_0 = arith.constant 0 : index
    %0 = vector.load %arg1[%c0, %c0_0] : memref<4x256xf32, #tpu.memory_space<vmem>>, vector<4x256xf32>
    %c0_1 = arith.constant 0 : index
    %c0_2 = arith.constant 0 : index
    %1 = vector.load %arg2[%c0_1, %c0_2] : memref<4x1xf32, #tpu.memory_space<vmem>>, vector<4x1xf32>
    %2 = vector.broadcast %1 : vector<4x1xf32> to vector<4x256xf32>
    %3 = arith.mulf %0, %2 : vector<4x256xf32>
    %c0_3 = arith.constant 0 : index
    %c0_4 = arith.constant 0 : index
    %4 = vector.load %arg3[%c0_3, %c0_4] : memref<4x1xf32, #tpu.memory_space<vmem>>, vector<4x1xf32>
    %5 = vector.broadcast %4 : vector<4x1xf32> to vector<4x256xf32>
    %6 = arith.addf %3, %5 : vector<4x256xf32>
    %cst = arith.constant 0.000000e+00 : f32
    %7 = vector.broadcast %cst : f32 to vector<4x256xf32>
    %8 = arith.maximumf %6, %7 : vector<4x256xf32>
    %c0_5 = arith.constant 0 : index
    %c0_6 = arith.constant 0 : index
    %9 = vector.load %arg5[%c0_5, %c0_6] : memref<2x256xi32, #tpu.memory_space<vmem>>, vector<1x256xi32>
    %c1 = arith.constant 1 : index
    %c0_7 = arith.constant 0 : index
    %10 = vector.load %arg5[%c1, %c0_7] : memref<2x256xi32, #tpu.memory_space<vmem>>, vector<1x256xi32>
    %c1_i32 = arith.constant 1 : i32
    %11 = vector.broadcast %c1_i32 : i32 to vector<1x256xi32>
    %12 = arith.cmpi sge, %9, %11 : vector<1x256xi32>
    %c14_i32 = arith.constant 14 : i32
    %13 = vector.broadcast %c14_i32 : i32 to vector<1x256xi32>
    %14 = arith.cmpi sle, %9, %13 : vector<1x256xi32>
    %c1_i32_8 = arith.constant 1 : i32
    %15 = vector.broadcast %c1_i32_8 : i32 to vector<1x256xi32>
    %16 = arith.cmpi sge, %10, %15 : vector<1x256xi32>
    %c14_i32_9 = arith.constant 14 : i32
    %17 = vector.broadcast %c14_i32_9 : i32 to vector<1x256xi32>
    %18 = arith.cmpi sle, %10, %17 : vector<1x256xi32>
    %19 = vector.extract_strided_slice %8 {offsets = [0, 239], sizes = [4, 17], strides = [1, 1]} : vector<4x256xf32> to vector<4x17xf32>
    %20 = vector.extract_strided_slice %8 {offsets = [0, 0], sizes = [4, 239], strides = [1, 1]} : vector<4x256xf32> to vector<4x239xf32>
    %21 = tpu.concatenate %19, %20 in 1 : vector<4x17xf32>, vector<4x239xf32> -> vector<4x256xf32>
    %22 = arith.andi %12, %16 : vector<1x256xi1>
    %cst_10 = arith.constant 0.000000e+00 : f32
    %23 = vector.shape_cast %22 : vector<1x256xi1> to vector<1x256xi1>
    %24 = vector.broadcast %23 : vector<1x256xi1> to vector<4x256xi1>
    %25 = vector.broadcast %cst_10 : f32 to vector<4x256xf32>
    %26 = arith.select %24, %21, %25 : vector<4x256xi1>, vector<4x256xf32>
    %c0_11 = arith.constant 0 : index
    %c0_12 = arith.constant 0 : index
    %c0_13 = arith.constant 0 : index
    %27 = vector.load %arg4[%c0_11, %c0_12, %c0_13] : memref<9x4x4xbf16, #tpu.memory_space<vmem>>, vector<1x4x4xbf16>
    %28 = vector.shape_cast %27 : vector<1x4x4xbf16> to vector<4x4xbf16>
    %29 = arith.truncf %26 : vector<4x256xf32> to vector<4x256xbf16>
    %cst_14 = arith.constant dense<0.000000e+00> : vector<4x256xf32>
    %30 = tpu.matmul %28, %29, %cst_14 {dimension_numbers = #tpu.dot_dimension_numbers<[1], [0], [0], [1], [0, 0, 1, 1], [], []>} : vector<4x4xbf16>, vector<4x256xbf16>, vector<4x256xf32> -> vector<4x256xf32>
    %31 = vector.extract_strided_slice %8 {offsets = [0, 240], sizes = [4, 16], strides = [1, 1]} : vector<4x256xf32> to vector<4x16xf32>
    %32 = vector.extract_strided_slice %8 {offsets = [0, 0], sizes = [4, 240], strides = [1, 1]} : vector<4x256xf32> to vector<4x240xf32>
    %33 = tpu.concatenate %31, %32 in 1 : vector<4x16xf32>, vector<4x240xf32> -> vector<4x256xf32>
    %cst_15 = arith.constant 0.000000e+00 : f32
    %34 = vector.shape_cast %12 : vector<1x256xi1> to vector<1x256xi1>
    %35 = vector.broadcast %34 : vector<1x256xi1> to vector<4x256xi1>
    %36 = vector.broadcast %cst_15 : f32 to vector<4x256xf32>
    %37 = arith.select %35, %33, %36 : vector<4x256xi1>, vector<4x256xf32>
    %c1_16 = arith.constant 1 : index
    %c0_17 = arith.constant 0 : index
    %c0_18 = arith.constant 0 : index
    %38 = vector.load %arg4[%c1_16, %c0_17, %c0_18] : memref<9x4x4xbf16, #tpu.memory_space<vmem>>, vector<1x4x4xbf16>
    %39 = vector.shape_cast %38 : vector<1x4x4xbf16> to vector<4x4xbf16>
    %40 = arith.truncf %37 : vector<4x256xf32> to vector<4x256xbf16>
    %cst_19 = arith.constant dense<0.000000e+00> : vector<4x256xf32>
    %41 = tpu.matmul %39, %40, %cst_19 {dimension_numbers = #tpu.dot_dimension_numbers<[1], [0], [0], [1], [0, 0, 1, 1], [], []>} : vector<4x4xbf16>, vector<4x256xbf16>, vector<4x256xf32> -> vector<4x256xf32>
    %42 = arith.addf %30, %41 : vector<4x256xf32>
    %43 = vector.extract_strided_slice %8 {offsets = [0, 241], sizes = [4, 15], strides = [1, 1]} : vector<4x256xf32> to vector<4x15xf32>
    %44 = vector.extract_strided_slice %8 {offsets = [0, 0], sizes = [4, 241], strides = [1, 1]} : vector<4x256xf32> to vector<4x241xf32>
    %45 = tpu.concatenate %43, %44 in 1 : vector<4x15xf32>, vector<4x241xf32> -> vector<4x256xf32>
    %46 = arith.andi %12, %18 : vector<1x256xi1>
    %cst_20 = arith.constant 0.000000e+00 : f32
    %47 = vector.shape_cast %46 : vector<1x256xi1> to vector<1x256xi1>
    %48 = vector.broadcast %47 : vector<1x256xi1> to vector<4x256xi1>
    %49 = vector.broadcast %cst_20 : f32 to vector<4x256xf32>
    %50 = arith.select %48, %45, %49 : vector<4x256xi1>, vector<4x256xf32>
    %c2 = arith.constant 2 : index
    %c0_21 = arith.constant 0 : index
    %c0_22 = arith.constant 0 : index
    %51 = vector.load %arg4[%c2, %c0_21, %c0_22] : memref<9x4x4xbf16, #tpu.memory_space<vmem>>, vector<1x4x4xbf16>
    %52 = vector.shape_cast %51 : vector<1x4x4xbf16> to vector<4x4xbf16>
    %53 = arith.truncf %50 : vector<4x256xf32> to vector<4x256xbf16>
    %cst_23 = arith.constant dense<0.000000e+00> : vector<4x256xf32>
    %54 = tpu.matmul %52, %53, %cst_23 {dimension_numbers = #tpu.dot_dimension_numbers<[1], [0], [0], [1], [0, 0, 1, 1], [], []>} : vector<4x4xbf16>, vector<4x256xbf16>, vector<4x256xf32> -> vector<4x256xf32>
    %55 = arith.addf %42, %54 : vector<4x256xf32>
    %56 = vector.extract_strided_slice %8 {offsets = [0, 255], sizes = [4, 1], strides = [1, 1]} : vector<4x256xf32> to vector<4x1xf32>
    %57 = vector.extract_strided_slice %8 {offsets = [0, 0], sizes = [4, 255], strides = [1, 1]} : vector<4x256xf32> to vector<4x255xf32>
    %58 = tpu.concatenate %56, %57 in 1 : vector<4x1xf32>, vector<4x255xf32> -> vector<4x256xf32>
    %cst_24 = arith.constant 0.000000e+00 : f32
    %59 = vector.shape_cast %16 : vector<1x256xi1> to vector<1x256xi1>
    %60 = vector.broadcast %59 : vector<1x256xi1> to vector<4x256xi1>
    %61 = vector.broadcast %cst_24 : f32 to vector<4x256xf32>
    %62 = arith.select %60, %58, %61 : vector<4x256xi1>, vector<4x256xf32>
    %c3 = arith.constant 3 : index
    %c0_25 = arith.constant 0 : index
    %c0_26 = arith.constant 0 : index
    %63 = vector.load %arg4[%c3, %c0_25, %c0_26] : memref<9x4x4xbf16, #tpu.memory_space<vmem>>, vector<1x4x4xbf16>
    %64 = vector.shape_cast %63 : vector<1x4x4xbf16> to vector<4x4xbf16>
    %65 = arith.truncf %62 : vector<4x256xf32> to vector<4x256xbf16>
    %cst_27 = arith.constant dense<0.000000e+00> : vector<4x256xf32>
    %66 = tpu.matmul %64, %65, %cst_27 {dimension_numbers = #tpu.dot_dimension_numbers<[1], [0], [0], [1], [0, 0, 1, 1], [], []>} : vector<4x4xbf16>, vector<4x256xbf16>, vector<4x256xf32> -> vector<4x256xf32>
    %67 = arith.addf %55, %66 : vector<4x256xf32>
    %c4 = arith.constant 4 : index
    %c0_28 = arith.constant 0 : index
    %c0_29 = arith.constant 0 : index
    %68 = vector.load %arg4[%c4, %c0_28, %c0_29] : memref<9x4x4xbf16, #tpu.memory_space<vmem>>, vector<1x4x4xbf16>
    %69 = vector.shape_cast %68 : vector<1x4x4xbf16> to vector<4x4xbf16>
    %70 = arith.truncf %8 : vector<4x256xf32> to vector<4x256xbf16>
    %cst_30 = arith.constant dense<0.000000e+00> : vector<4x256xf32>
    %71 = tpu.matmul %69, %70, %cst_30 {dimension_numbers = #tpu.dot_dimension_numbers<[1], [0], [0], [1], [0, 0, 1, 1], [], []>} : vector<4x4xbf16>, vector<4x256xbf16>, vector<4x256xf32> -> vector<4x256xf32>
    %72 = arith.addf %67, %71 : vector<4x256xf32>
    %73 = vector.extract_strided_slice %8 {offsets = [0, 1], sizes = [4, 255], strides = [1, 1]} : vector<4x256xf32> to vector<4x255xf32>
    %74 = vector.extract_strided_slice %8 {offsets = [0, 0], sizes = [4, 1], strides = [1, 1]} : vector<4x256xf32> to vector<4x1xf32>
    %75 = tpu.concatenate %73, %74 in 1 : vector<4x255xf32>, vector<4x1xf32> -> vector<4x256xf32>
    %cst_31 = arith.constant 0.000000e+00 : f32
    %76 = vector.shape_cast %18 : vector<1x256xi1> to vector<1x256xi1>
    %77 = vector.broadcast %76 : vector<1x256xi1> to vector<4x256xi1>
    %78 = vector.broadcast %cst_31 : f32 to vector<4x256xf32>
    %79 = arith.select %77, %75, %78 : vector<4x256xi1>, vector<4x256xf32>
    %c5 = arith.constant 5 : index
    %c0_32 = arith.constant 0 : index
    %c0_33 = arith.constant 0 : index
    %80 = vector.load %arg4[%c5, %c0_32, %c0_33] : memref<9x4x4xbf16, #tpu.memory_space<vmem>>, vector<1x4x4xbf16>
    %81 = vector.shape_cast %80 : vector<1x4x4xbf16> to vector<4x4xbf16>
    %82 = arith.truncf %79 : vector<4x256xf32> to vector<4x256xbf16>
    %cst_34 = arith.constant dense<0.000000e+00> : vector<4x256xf32>
    %83 = tpu.matmul %81, %82, %cst_34 {dimension_numbers = #tpu.dot_dimension_numbers<[1], [0], [0], [1], [0, 0, 1, 1], [], []>} : vector<4x4xbf16>, vector<4x256xbf16>, vector<4x256xf32> -> vector<4x256xf32>
    %84 = arith.addf %72, %83 : vector<4x256xf32>
    %85 = vector.extract_strided_slice %8 {offsets = [0, 15], sizes = [4, 241], strides = [1, 1]} : vector<4x256xf32> to vector<4x241xf32>
    %86 = vector.extract_strided_slice %8 {offsets = [0, 0], sizes = [4, 15], strides = [1, 1]} : vector<4x256xf32> to vector<4x15xf32>
    %87 = tpu.concatenate %85, %86 in 1 : vector<4x241xf32>, vector<4x15xf32> -> vector<4x256xf32>
    %88 = arith.andi %14, %16 : vector<1x256xi1>
    %cst_35 = arith.constant 0.000000e+00 : f32
    %89 = vector.shape_cast %88 : vector<1x256xi1> to vector<1x256xi1>
    %90 = vector.broadcast %89 : vector<1x256xi1> to vector<4x256xi1>
    %91 = vector.broadcast %cst_35 : f32 to vector<4x256xf32>
    %92 = arith.select %90, %87, %91 : vector<4x256xi1>, vector<4x256xf32>
    %c6 = arith.constant 6 : index
    %c0_36 = arith.constant 0 : index
    %c0_37 = arith.constant 0 : index
    %93 = vector.load %arg4[%c6, %c0_36, %c0_37] : memref<9x4x4xbf16, #tpu.memory_space<vmem>>, vector<1x4x4xbf16>
    %94 = vector.shape_cast %93 : vector<1x4x4xbf16> to vector<4x4xbf16>
    %95 = arith.truncf %92 : vector<4x256xf32> to vector<4x256xbf16>
    %cst_38 = arith.constant dense<0.000000e+00> : vector<4x256xf32>
    %96 = tpu.matmul %94, %95, %cst_38 {dimension_numbers = #tpu.dot_dimension_numbers<[1], [0], [0], [1], [0, 0, 1, 1], [], []>} : vector<4x4xbf16>, vector<4x256xbf16>, vector<4x256xf32> -> vector<4x256xf32>
    %97 = arith.addf %84, %96 : vector<4x256xf32>
    %98 = vector.extract_strided_slice %8 {offsets = [0, 16], sizes = [4, 240], strides = [1, 1]} : vector<4x256xf32> to vector<4x240xf32>
    %99 = vector.extract_strided_slice %8 {offsets = [0, 0], sizes = [4, 16], strides = [1, 1]} : vector<4x256xf32> to vector<4x16xf32>
    %100 = tpu.concatenate %98, %99 in 1 : vector<4x240xf32>, vector<4x16xf32> -> vector<4x256xf32>
    %cst_39 = arith.constant 0.000000e+00 : f32
    %101 = vector.shape_cast %14 : vector<1x256xi1> to vector<1x256xi1>
    %102 = vector.broadcast %101 : vector<1x256xi1> to vector<4x256xi1>
    %103 = vector.broadcast %cst_39 : f32 to vector<4x256xf32>
    %104 = arith.select %102, %100, %103 : vector<4x256xi1>, vector<4x256xf32>
    %c7 = arith.constant 7 : index
    %c0_40 = arith.constant 0 : index
    %c0_41 = arith.constant 0 : index
    %105 = vector.load %arg4[%c7, %c0_40, %c0_41] : memref<9x4x4xbf16, #tpu.memory_space<vmem>>, vector<1x4x4xbf16>
    %106 = vector.shape_cast %105 : vector<1x4x4xbf16> to vector<4x4xbf16>
    %107 = arith.truncf %104 : vector<4x256xf32> to vector<4x256xbf16>
    %cst_42 = arith.constant dense<0.000000e+00> : vector<4x256xf32>
    %108 = tpu.matmul %106, %107, %cst_42 {dimension_numbers = #tpu.dot_dimension_numbers<[1], [0], [0], [1], [0, 0, 1, 1], [], []>} : vector<4x4xbf16>, vector<4x256xbf16>, vector<4x256xf32> -> vector<4x256xf32>
    %109 = arith.addf %97, %108 : vector<4x256xf32>
    %110 = vector.extract_strided_slice %8 {offsets = [0, 17], sizes = [4, 239], strides = [1, 1]} : vector<4x256xf32> to vector<4x239xf32>
    %111 = vector.extract_strided_slice %8 {offsets = [0, 0], sizes = [4, 17], strides = [1, 1]} : vector<4x256xf32> to vector<4x17xf32>
    %112 = tpu.concatenate %110, %111 in 1 : vector<4x239xf32>, vector<4x17xf32> -> vector<4x256xf32>
    %113 = arith.andi %14, %18 : vector<1x256xi1>
    %cst_43 = arith.constant 0.000000e+00 : f32
    %114 = vector.shape_cast %113 : vector<1x256xi1> to vector<1x256xi1>
    %115 = vector.broadcast %114 : vector<1x256xi1> to vector<4x256xi1>
    %116 = vector.broadcast %cst_43 : f32 to vector<4x256xf32>
    %117 = arith.select %115, %112, %116 : vector<4x256xi1>, vector<4x256xf32>
    %c8 = arith.constant 8 : index
    %c0_44 = arith.constant 0 : index
    %c0_45 = arith.constant 0 : index
    %118 = vector.load %arg4[%c8, %c0_44, %c0_45] : memref<9x4x4xbf16, #tpu.memory_space<vmem>>, vector<1x4x4xbf16>
    %119 = vector.shape_cast %118 : vector<1x4x4xbf16> to vector<4x4xbf16>
    %120 = arith.truncf %117 : vector<4x256xf32> to vector<4x256xbf16>
    %cst_46 = arith.constant dense<0.000000e+00> : vector<4x256xf32>
    %121 = tpu.matmul %119, %120, %cst_46 {dimension_numbers = #tpu.dot_dimension_numbers<[1], [0], [0], [1], [0, 0, 1, 1], [], []>} : vector<4x4xbf16>, vector<4x256xbf16>, vector<4x256xf32> -> vector<4x256xf32>
    %122 = arith.addf %109, %121 : vector<4x256xf32>
    %c0_47 = arith.constant 0 : index
    %c0_48 = arith.constant 0 : index
    %123 = vector.load %arg6[%c0_47, %c0_48] : memref<4x256xf32, #tpu.memory_space<vmem>>, vector<4x256xf32>
    tpu.vector_store %arg6[%c0_47, %c0_48], %122 {strides = array<i32>} : memref<4x256xf32, #tpu.memory_space<vmem>>, vector<4x256xf32>,
    %cst_49 = arith.constant dense<0.000000e+00> : vector<4xf32>
    %124 = vector.multi_reduction <add>, %122, %cst_49 [1] : vector<4x256xf32> to vector<4xf32>
    %125 = vector.shape_cast %124 : vector<4xf32> to vector<4x1xf32>
    %c0_50 = arith.constant 0 : index
    %c0_51 = arith.constant 0 : index
    %c0_52 = arith.constant 0 : index
    %126 = vector.load %arg7[%c0_50, %c0_51, %c0_52] : memref<1x4x2xf32, #tpu.memory_space<vmem>>, vector<1x4x1xf32>
    %127 = vector.shape_cast %126 : vector<1x4x1xf32> to vector<4x1xf32>
    %128 = vector.shape_cast %125 : vector<4x1xf32> to vector<1x4x1xf32>
    tpu.vector_store %arg7[%c0_50, %c0_51, %c0_52], %128 {strides = array<i32>} : memref<1x4x2xf32, #tpu.memory_space<vmem>>, vector<1x4x1xf32>,
    %129 = arith.mulf %122, %122 : vector<4x256xf32>
    %cst_53 = arith.constant dense<0.000000e+00> : vector<4xf32>
    %130 = vector.multi_reduction <add>, %129, %cst_53 [1] : vector<4x256xf32> to vector<4xf32>
    %131 = vector.shape_cast %130 : vector<4xf32> to vector<4x1xf32>
    %c0_54 = arith.constant 0 : index
    %c0_55 = arith.constant 0 : index
    %c1_56 = arith.constant 1 : index
    %132 = vector.load %arg7[%c0_54, %c0_55, %c1_56] : memref<1x4x2xf32, #tpu.memory_space<vmem>>, vector<1x4x1xf32>
    %133 = vector.shape_cast %132 : vector<1x4x1xf32> to vector<4x1xf32>
    %134 = vector.shape_cast %131 : vector<4x1xf32> to vector<1x4x1xf32>
    tpu.vector_store %arg7[%c0_54, %c0_55, %c1_56], %134 {strides = array<i32>} : memref<1x4x2xf32, #tpu.memory_space<vmem>>, vector<1x4x1xf32>,
    return
  }
  func.func @transform_0(%arg0: i32) -> (i32, i32) {
    %c0_i32 = arith.constant 0 : i32
    %c0_i32_0 = arith.constant 0 : i32
    return %c0_i32, %arg0 : i32, i32
  }
  func.func @transform_1(%arg0: i32) -> (i32, i32) {
    %c0_i32 = arith.constant 0 : i32
    %c0_i32_0 = arith.constant 0 : i32
    %c0_i32_1 = arith.constant 0 : i32
    return %c0_i32, %c0_i32_0 : i32, i32
  }
  func.func @transform_2(%arg0: i32) -> (i32, i32) {
    %c0_i32 = arith.constant 0 : i32
    %c0_i32_0 = arith.constant 0 : i32
    %c0_i32_1 = arith.constant 0 : i32
    return %c0_i32, %c0_i32_0 : i32, i32
  }
  func.func @transform_3(%arg0: i32) -> (i32, i32, i32) {
    %c0_i32 = arith.constant 0 : i32
    %c0_i32_0 = arith.constant 0 : i32
    %c0_i32_1 = arith.constant 0 : i32
    %c0_i32_2 = arith.constant 0 : i32
    return %c0_i32, %c0_i32_0, %c0_i32_1 : i32, i32, i32
  }
  func.func @transform_4(%arg0: i32) -> (i32, i32) {
    %c0_i32 = arith.constant 0 : i32
    %c0_i32_0 = arith.constant 0 : i32
    %c0_i32_1 = arith.constant 0 : i32
    return %c0_i32, %c0_i32_0 : i32, i32
  }
  func.func @transform_5(%arg0: i32) -> (i32, i32) {
    %c0_i32 = arith.constant 0 : i32
    %c0_i32_0 = arith.constant 0 : i32
    return %c0_i32, %arg0 : i32, i32
  }
  func.func @transform_6(%arg0: i32) -> (i32, i32, i32) {
    %c0_i32 = arith.constant 0 : i32
    %c0_i32_0 = arith.constant 0 : i32
    %c0_i32_1 = arith.constant 0 : i32
    return %arg0, %c0_i32, %c0_i32_0 : i32, i32, i32
  }
}

</mosaic_0001>

<llo_original>
// kernel: residual_block_pallas.2
$region0: #{residual_block_pallas.2}
  #allocation0 [shape = 'u32[]', space=smem, size = 0x4, offset = 0x4, fixed_abs, tag = 'smem constant byte address 0x4 - core index']
  #allocation1 [shape = 'u32[144,128]{1,0:T(1,128)}', space=vmem, size = 0x12000, scoped, tag = 'internal scratch']
  %s0 = inlined_call_operand.vmem [shape: f32[4,512], index: 0, kind: input, shape index: {}]
  %s1 = inlined_call_operand.vmem [shape: bf16[9,4,4], index: 1, kind: input, shape index: {}]
  %s2 = inlined_call_operand.vmem [shape: s32[2,256], index: 2, kind: input, shape index: {}]
  %s3 = inlined_call_operand.vmem [shape: f32[4,512], index: 3, kind: output, shape index: {0}]
  %s4 = inlined_call_operand.vmem [shape: f32[2,4,2], index: 4, kind: output, shape index: {1}]
  %5 = xla_tuple %s3, %s4
  %s6 = sld [smem:[#allocation0]]
  $region53: #{residual_block_pallas.2} parent=0
    _
  %s8 = ssub.s32 1, %s6
  %s9 = scalar_select 0, %s8, %s6
  loop: start=0, step=1, limit=4
  $region2: #{residual_block_pallas.2} parent=0 // loop_pre_header
    _
  $region3: #{residual_block_pallas.2} parent=0 // loop_header
    %s11 = sphi 0, %s15
    %p12 = scmp.ge.s32.totalorder %s11, 4
    %s21 = sphi 0, %s23
    %s24 = sphi 0, %s21
    %s25 = sphi 0, %s24
    %s41 = sphi 0, %s25
    %s45 = sphi 0, %s45
    %s47 = sphi 0, %s45
    %s48 = sphi 0, %s47
    %s62 = sphi 0, %s48
    %s66 = sphi 0, %s66
    %s68 = sphi 0, %s66
    %s69 = sphi 0, %s68
    %s83 = sphi 0, %s69
    %s89 = sphi 0, %s91
    %s92 = sphi 0, %s89
    %s93 = sphi 0, %s92
    %s109 = sphi 0, %s93
    %s115 = sphi 0, %s117
    %s118 = sphi 0, %s115
    %s119 = sphi 0, %s118
    %s135 = sphi 0, %s119
  $region4: #{residual_block_pallas.2} parent=0 // loop_header_branch
    %14 = sbr.rel (%p12) target = $region8
  $region5: #{residual_block_pallas.2} parent=0 // loop_body
    %s16 = ssub.s32 %s11, 1
    %s17 = ssub.s32 %s11, 2
    %s18 = sadd.s32 %s11, 1
    %s19 = ssub.s32 %s11, %s18
    %p20 = scmp.eq.s32.totalorder %s19, 0
    %s22 = sadd.s32 %s21, 1
    %s23 = scalar_select %p20, %s21, %s22
    %p26 = pneg %p20
    %p27 = scmp.eq.s32.totalorder %s11, 1
    %p28 = por %p26, %p27
    %p29 = scmp.ne.s32.totalorder %s21, %s24
    %p30 = scmp.eq.s32.totalorder %s11, 0
    %p31 = por %p29, %p30
    %p32 = scmp.ne.s32.totalorder %s21, %s24
    %p33 = scmp.eq.s32.totalorder %s16, 1
    %p34 = por %p32, %p33
    %p35 = scmp.ne.s32.totalorder %s24, %s25
    %p36 = scmp.eq.s32.totalorder %s16, 0
    %p37 = por %p35, %p36
    %p38 = scmp.ne.s32.totalorder %s24, %s25
    %p39 = scmp.eq.s32.totalorder %s17, 1
    %p40 = por %p38, %p39
    %p42 = scmp.ne.s32.totalorder %s25, %s41
    %p43 = scmp.eq.s32.totalorder %s17, 0
    %p44 = por %p42, %p43
    %s46 = sadd.s32 %s45, 1
    %p49 = scmp.eq.s32.totalorder %s11, 1
    %p50 = scmp.ne.s32.totalorder %s45, %s47
    %p51 = scmp.eq.s32.totalorder %s11, 0
    %p52 = por %p50, %p51
    %p53 = scmp.ne.s32.totalorder %s45, %s47
    %p54 = scmp.eq.s32.totalorder %s16, 1
    %p55 = por %p53, %p54
    %p56 = scmp.ne.s32.totalorder %s47, %s48
    %p57 = scmp.eq.s32.totalorder %s16, 0
    %p58 = por %p56, %p57
    %p59 = scmp.ne.s32.totalorder %s47, %s48
    %p60 = scmp.eq.s32.totalorder %s17, 1
    %p61 = por %p59, %p60
    %p63 = scmp.ne.s32.totalorder %s48, %s62
    %p64 = scmp.eq.s32.totalorder %s17, 0
    %p65 = por %p63, %p64
    %s67 = sadd.s32 %s66, 1
    %p70 = scmp.eq.s32.totalorder %s11, 1
    %p71 = scmp.ne.s32.totalorder %s66, %s68
    %p72 = scmp.eq.s32.totalorder %s11, 0
    %p73 = por %p71, %p72
    %p74 = scmp.ne.s32.totalorder %s66, %s68
    %p75 = scmp.eq.s32.totalorder %s16, 1
    %p76 = por %p74, %p75
    %p77 = scmp.ne.s32.totalorder %s68, %s69
    %p78 = scmp.eq.s32.totalorder %s16, 0
    %p79 = por %p77, %p78
    %p80 = scmp.ne.s32.totalorder %s68, %s69
    %p81 = scmp.eq.s32.totalorder %s17, 1
    %p82 = por %p80, %p81
    %p84 = scmp.ne.s32.totalorder %s69, %s83
    %p85 = scmp.eq.s32.totalorder %s17, 0
    %p86 = por %p84, %p85
    %s87 = ssub.s32 %s11, %s18
    %p88 = scmp.eq.s32.totalorder %s87, 0
    %s90 = sadd.s32 %s89, 1
    %s91 = scalar_select %p88, %s89, %s90
    %p94 = pneg %p88
    %p95 = scmp.eq.s32.totalorder %s11, 1
    %p96 = por %p94, %p95
    %p97 = scmp.ne.s32.totalorder %s89, %s92
    %p98 = scmp.eq.s32.totalorder %s11, 0
    %p99 = por %p97, %p98
    %p100 = scmp.ne.s32.totalorder %s89, %s92
    %p101 = scmp.eq.s32.totalorder %s16, 1
    %p102 = por %p100, %p101
    %p103 = scmp.ne.s32.totalorder %s92, %s93
    %p104 = scmp.eq.s32.totalorder %s16, 0
    %p105 = por %p103, %p104
    %p106 = scmp.ne.s32.totalorder %s92, %s93
    %p107 = scmp.eq.s32.totalorder %s17, 1
    %p108 = por %p106, %p107
    %p110 = scmp.ne.s32.totalorder %s93, %s109
    %p111 = scmp.eq.s32.totalorder %s17, 0
    %p112 = por %p110, %p111
    %s113 = ssub.s32 %s11, %s18
    %p114 = scmp.eq.s32.totalorder %s113, 0
    %s116 = sadd.s32 %s115, 1
    %s117 = scalar_select %p114, %s115, %s116
    %p120 = pneg %p114
    %p121 = scmp.eq.s32.totalorder %s11, 1
    %p122 = por %p120, %p121
    %p123 = scmp.ne.s32.totalorder %s115, %s118
    %p124 = scmp.eq.s32.totalorder %s11, 0
    %p125 = por %p123, %p124
    %p126 = scmp.ne.s32.totalorder %s115, %s118
    %p127 = scmp.eq.s32.totalorder %s16, 1
    %p128 = por %p126, %p127
    %p129 = scmp.ne.s32.totalorder %s118, %s119
    %p130 = scmp.eq.s32.totalorder %s16, 0
    %p131 = por %p129, %p130
    %p132 = scmp.ne.s32.totalorder %s118, %s119
    %p133 = scmp.eq.s32.totalorder %s17, 1
    %p134 = por %p132, %p133
    %p136 = scmp.ne.s32.totalorder %s119, %s135
    %p137 = scmp.eq.s32.totalorder %s17, 0
    %p138 = por %p136, %p137
    %p139 = scmp.le.s32.totalorder 1, %s11
    %p140 = scmp.lt.s32.totalorder %s11, 3
    %p141 = pnand %p139, %p140
    %p142 = pneg %p141
    // Predicated region
    $region9: #{residual_block_pallas.2} parent=5 // pred_check
      _
    $region10: #{residual_block_pallas.2} parent=5 // pred_check_branch
      %144 = sbr.rel (%p141) target = $region12
    $region11: #{residual_block_pallas.2} parent=5 // pred_region
      %s145 = ssub.s32 %s11, 1
      // Predicated region
      $region13: #{residual_block_pallas.2} parent=11 // pred_check
        %p146 = pneg %p58
      $region14: #{residual_block_pallas.2} parent=11 // pred_check_branch
        %148 = sbr.rel (%p146) target = $region16
      $region15: #{residual_block_pallas.2} parent=11 // pred_region
        _
      $region16: #{residual_block_pallas.2} parent=11 // pred_fallthru
        _
      // Predicated region
      $region17: #{residual_block_pallas.2} parent=11 // pred_check
        %p149 = pneg %p79
      $region18: #{residual_block_pallas.2} parent=11 // pred_check_branch
        %151 = sbr.rel (%p149) target = $region20
      $region19: #{residual_block_pallas.2} parent=11 // pred_region
        _
      $region20: #{residual_block_pallas.2} parent=11 // pred_fallthru
        _
    $region12: #{residual_block_pallas.2} parent=5 // pred_fallthru
      _
    %p152 = scmp.lt.s32.totalorder %s11, 2
    // Predicated region
    $region21: #{residual_block_pallas.2} parent=5 // pred_check
      %p153 = pneg %p152
    $region22: #{residual_block_pallas.2} parent=5 // pred_check_branch
      %155 = sbr.rel (%p153) target = $region24
    $region23: #{residual_block_pallas.2} parent=5 // pred_region
      // Predicated region
      $region25: #{residual_block_pallas.2} parent=23 // pred_check
        %p156 = pneg %p31
      $region26: #{residual_block_pallas.2} parent=23 // pred_check_branch
        %158 = sbr.rel (%p156) target = $region28
      $region27: #{residual_block_pallas.2} parent=23 // pred_region
        %s159 = smul.u32 2, %s11
        %p160 = scmp.lt.s32.totalorder %s159, 3
        %s161 = scalar_select %p160, %s159, 3
        %s162 = smul.addr %s161, 4
        %s163 = scalar_lea.vmem %s0, %s162
        %s164 = smul.u32 2, %s11
      $region28: #{residual_block_pallas.2} parent=23 // pred_fallthru
        _
    $region24: #{residual_block_pallas.2} parent=5 // pred_fallthru
      _
    %p165 = scmp.le.s32.totalorder 1, %s11
    %p166 = scmp.lt.s32.totalorder %s11, 3
    %p167 = pnand %p165, %p166
    %p168 = pneg %p167
    // Predicated region
    $region29: #{residual_block_pallas.2} parent=5 // pred_check
      _
    $region30: #{residual_block_pallas.2} parent=5 // pred_check_branch
      %170 = sbr.rel (%p167) target = $region32
    $region31: #{residual_block_pallas.2} parent=5 // pred_region
      %s171 = ssub.s32 %s11, 1
      %s172 = smul.u32 2, %s16
      %p173 = scmp.lt.s32.totalorder %s172, 3
      %s174 = scalar_select %p173, %s172, 3
      %s175 = smul.addr %s174, 4
      %s176 = scalar_lea.vmem %s0, %s175
      %p177 = pneg %p37
      %p178 = pneg %p34
      %p179 = pneg %p58
      %p180 = pneg %p55
      %p181 = pneg %p79
      %p182 = pneg %p76
      %p183 = pneg %p105
      %p184 = pneg %p102
      %s185 = smul.u32 2, %s16
      %p186 = scmp.lt.s32.totalorder %s185, 3
      %s187 = scalar_select %p186, %s185, 3
      %s188 = smul.addr %s187, 4
      %s189 = scalar_lea.vmem %s3, %s188
      %p190 = pneg %p131
      %p191 = pneg %p128
      %p192 = scmp.lt.s32.totalorder %s16, 1
      %s193 = scalar_select %p192, %s16, 1
      %s194 = smul.addr %s193, 4
      %s195 = scalar_lea.vmem %s4, %s194
      %s196 = smul.u32 2, %s16
      %p197 = scmp.lt.s32.totalorder %s196, 3
      %s198 = scalar_select %p197, %s196, 3
      %s199 = smul.addr %s198, 4
      %s200 = scalar_lea.vmem %s0, %s199
      %s201 = smul.u32 2, %s16
      %s202 = smul.u32 2, %s16
      %p203 = scmp.lt.s32.totalorder %s202, 3
      %s204 = scalar_select %p203, %s202, 3
      %s205 = smul.addr %s204, 4
      %s206 = scalar_lea.vmem %s3, %s205
      %s207 = smul.u32 2, %s16
      %p208 = scmp.lt.s32.totalorder %s16, 1
      %s209 = scalar_select %p208, %s16, 1
      %s210 = smul.addr %s209, 4
      %s211 = scalar_lea.vmem %s4, %s210
      %v213 = vld [vmem:[%s200] sm:$0xff]
      %v214 = vld [vmem:[%s2] ss:$2 sm:$0x3]
      %s215 = scalar_lea.vmem %s2, 1
      %v216 = vld [vmem:[%s215] ss:$2 sm:$0x3]
      %vm217 = vcmp.ge.s32.totalorder %v214, 1
      %vm218 = vcmp.le.s32.totalorder %v214, 14
      %vm219 = vcmp.ge.s32.totalorder %v216, 1
      %vm220 = vcmp.le.s32.totalorder %v216, 14
      %v222 = vcombine.high %v213, %v213
      %223 = vrot.lane.b32.xlu0 %v222, 17
      %v224 = vpop.permute.xlu0 %223
      %226 = vrot.lane.b32.xlu0 %v213, 17
      %v227 = vpop.permute.xlu0 %226
      %vm228 = vcmask 138240
      %v229 = vsel %vm228, %v227, %v224
      %v232 = vsel %vm228, %v224, %v227
      %vm233 = vmand %vm217, %vm219
      %v234 = vsel %vm233, 1, 0
      %v235 = vlaneseq
      %v236 = vshrl.u32 %v235, 7
      %v237 = vsub.s32 0, %v236
      %v238 = vrot.slane %v234, %v237
      %v239 = vlaneseq
      %v240 = vshrl.u32 %v239, 7
      %v241 = vsub.s32 1, %v240
      %v242 = vrot.slane %v234, %v241
      %vm243 = vcmp.eq.s32.totalorder %v238, 1
      %vm244 = vcmp.eq.s32.totalorder %v242, 1
      %v245 = vsel %vm243, %v232, 0.0
      %v246 = vsel %vm244, %v229, 0.0
      %v247 = vld [vmem:[%s1] sm:$0x3]
      %v248 = vpack.c.bf16 %v245, %v245
      %v249 = vpack.c.bf16 %v246, %v246
      %250 = vrot.lane.b32.xlu0 %v222, 16
      %v251 = vpop.permute.xlu0 %250
      %253 = vrot.lane.b32.xlu0 %v213, 16
      %v254 = vpop.permute.xlu0 %253
      %vm255 = vcmask 130048
      %v256 = vsel %vm255, %v254, %v251
      %v259 = vsel %vm255, %v251, %v254
      %v260 = vsel %vm217, 1, 0
      %v261 = vlaneseq
      %v262 = vshrl.u32 %v261, 7
      %v263 = vsub.s32 0, %v262
      %v264 = vrot.slane %v260, %v263
      %v265 = vlaneseq
      %v266 = vshrl.u32 %v265, 7
      %v267 = vsub.s32 1, %v266
      %v268 = vrot.slane %v260, %v267
      %vm269 = vcmp.eq.s32.totalorder %v264, 1
      %vm270 = vcmp.eq.s32.totalorder %v268, 1
      %v271 = vsel %vm269, %v259, 0.0
      %v272 = vsel %vm270, %v256, 0.0
      %s273 = scalar_lea.vmem %s1, 2
      %v274 = vld [vmem:[%s273] sm:$0x3]
      %v275 = vpack.c.bf16 %v271, %v271
      %v276 = vpack.c.bf16 %v272, %v272
      %vm277 = vcmask 31744
      %v279 = vsel %vm277, %v274, 0
      %vm281 = vcmask 1041408
      %v283 = vsel %vm281, %v275, 0
      %v286 = vsel %vm281, %v276, 0
      %288 = vmatprep.subr.bf16.mxu0 %v286
      %289 = vmatpush1.bf16.msra.mxu0 %v283
      %290 = vmatprep.subr.bf16.mxu0 0
      %291 = vmatpush1.bf16.msra.mxu0 0
      %292 = vmatprep.subr.bf16.mxu0 0
      %293 = vmatpush1.bf16.msra.mxu0 0
      %294 = vmatprep.subr.bf16.mxu0 0
      %295 = vmatpush1.bf16.msra.mxu0 0
      %296 = vmatprep.subr.bf16.mxu0 0
      %297 = vmatpush1.bf16.msra.mxu0 0
      %298 = vmatprep.subr.bf16.mxu0 0
      %299 = vmatpush1.bf16.msra.mxu0 0
      %300 = vmatprep.subr.bf16.mxu0 0
      %301 = vmatpush1.bf16.msra.mxu0 0
      %302 = vmatprep.subr.bf16.mxu0 0
      %303 = vmatpush1.bf16.msra.mxu0 0
      %304 = vmatprep.subr.bf16.mxu0 0
      %305 = vmatpush1.bf16.msra.mxu0 0
      %306 = vmatprep.subr.bf16.mxu0 0
      %307 = vmatpush1.bf16.msra.mxu0 0
      %308 = vmatprep.subr.bf16.mxu0 0
      %309 = vmatpush1.bf16.msra.mxu0 0
      %310 = vmatprep.subr.bf16.mxu0 0
      %311 = vmatpush1.bf16.msra.mxu0 0
      %312 = vmatprep.subr.bf16.mxu0 0
      %313 = vmatpush1.bf16.msra.mxu0 0
      %314 = vmatprep.subr.bf16.mxu0 0
      %315 = vmatpush1.bf16.msra.mxu0 0
      %316 = vmatprep.subr.bf16.mxu0 0
      %317 = vmatpush1.bf16.msra.mxu0 0
      %318 = vmatprep.subr.bf16.mxu0 0
      %319 = vmatpush1.bf16.msra.mxu0 0
      %320 = vmatprep.mubr.bf16.mxu0 0
      %321 = vmatmul.mubr.bf16.gmra.mrb[0].mxu0 %v279
      %v322 = vpop.f32.mrb[0].mxu0
      %v323 = vadd.f32 0.0, %v322
      %v324 = vpop.f32.mrb[0].mxu0
      %v325 = vadd.f32 0.0, %v324
      %v326 = vpop.f32.mrb[0].mxu0
      %v327 = vpop.f32.mrb[0].mxu0
      %328 = vdwg.mxu0
      %v330 = vsel %vm277, %v247, 0
      %v333 = vsel %vm281, %v248, 0
      %v336 = vsel %vm281, %v249, 0
      %338 = vmatprep.subr.bf16.mxu0 %v336
      %339 = vmatpush1.bf16.msra.mxu0 %v333
      %340 = vmatprep.subr.bf16.mxu0 0
      %341 = vmatpush1.bf16.msra.mxu0 0
      %342 = vmatprep.subr.bf16.mxu0 0
      %343 = vmatpush1.bf16.msra.mxu0 0
      %344 = vmatprep.subr.bf16.mxu0 0
      %345 = vmatpush1.bf16.msra.mxu0 0
      %346 = vmatprep.subr.bf16.mxu0 0
      %347 = vmatpush1.bf16.msra.mxu0 0
      %348 = vmatprep.subr.bf16.mxu0 0
      %349 = vmatpush1.bf16.msra.mxu0 0
      %350 = vmatprep.subr.bf16.mxu0 0
      %351 = vmatpush1.bf16.msra.mxu0 0
      %352 = vmatprep.subr.bf16.mxu0 0
      %353 = vmatpush1.bf16.msra.mxu0 0
      %354 = vmatprep.subr.bf16.mxu0 0
      %355 = vmatpush1.bf16.msra.mxu0 0
      %356 = vmatprep.subr.bf16.mxu0 0
      %357 = vmatpush1.bf16.msra.mxu0 0
      %358 = vmatprep.subr.bf16.mxu0 0
      %359 = vmatpush1.bf16.msra.mxu0 0
      %360 = vmatprep.subr.bf16.mxu0 0
      %361 = vmatpush1.bf16.msra.mxu0 0
      %362 = vmatprep.subr.bf16.mxu0 0
      %363 = vmatpush1.bf16.msra.mxu0 0
      %364 = vmatprep.subr.bf16.mxu0 0
      %365 = vmatpush1.bf16.msra.mxu0 0
      %366 = vmatprep.subr.bf16.mxu0 0
      %367 = vmatpush1.bf16.msra.mxu0 0
      %368 = vmatprep.subr.bf16.mxu0 0
      %369 = vmatpush1.bf16.msra.mxu0 0
      %370 = vmatprep.mubr.bf16.mxu0 0
      %371 = vmatmul.mubr.bf16.gmra.mrb[0].mxu0 %v330
      %v372 = vpop.f32.mrb[0].mxu0
      %v373 = vadd.f32 %v323, %v372
      %v374 = vpop.f32.mrb[0].mxu0
      %v375 = vadd.f32 %v325, %v374
      %v376 = vpop.f32.mrb[0].mxu0
      %v377 = vpop.f32.mrb[0].mxu0
      %378 = vdwg.mxu0
      %379 = vrot.lane.b32.xlu0 %v222, 15
      %v380 = vpop.permute.xlu0 %379
      %382 = vrot.lane.b32.xlu0 %v213, 15
      %v383 = vpop.permute.xlu0 %382
      %vm384 = vcmask 121856
      %v385 = vsel %vm384, %v383, %v380
      %v388 = vsel %vm384, %v380, %v383
      %vm389 = vmand %vm217, %vm220
      %v390 = vsel %vm389, 1, 0
      %v391 = vlaneseq
      %v392 = vshrl.u32 %v391, 7
      %v393 = vsub.s32 0, %v392
      %v394 = vrot.slane %v390, %v393
      %v395 = vlaneseq
      %v396 = vshrl.u32 %v395, 7
      %v397 = vsub.s32 1, %v396
      %v398 = vrot.slane %v390, %v397
      %vm399 = vcmp.eq.s32.totalorder %v394, 1
      %vm400 = vcmp.eq.s32.totalorder %v398, 1
      %v401 = vsel %vm399, %v388, 0.0
      %v402 = vsel %vm400, %v385, 0.0
      %s403 = scalar_lea.vmem %s1, 4
      %v404 = vld [vmem:[%s403] sm:$0x3]
      %v405 = vpack.c.bf16 %v401, %v401
      %v406 = vpack.c.bf16 %v402, %v402
      %v408 = vsel %vm277, %v404, 0
      %v411 = vsel %vm281, %v405, 0
      %v414 = vsel %vm281, %v406, 0
      %416 = vmatprep.subr.bf16.mxu0 %v414
      %417 = vmatpush1.bf16.msra.mxu0 %v411
      %418 = vmatprep.subr.bf16.mxu0 0
      %419 = vmatpush1.bf16.msra.mxu0 0
      %420 = vmatprep.subr.bf16.mxu0 0
      %421 = vmatpush1.bf16.msra.mxu0 0
      %422 = vmatprep.subr.bf16.mxu0 0
      %423 = vmatpush1.bf16.msra.mxu0 0
      %424 = vmatprep.subr.bf16.mxu0 0
      %425 = vmatpush1.bf16.msra.mxu0 0
      %426 = vmatprep.subr.bf16.mxu0 0
      %427 = vmatpush1.bf16.msra.mxu0 0
      %428 = vmatprep.subr.bf16.mxu0 0
      %429 = vmatpush1.bf16.msra.mxu0 0
      %430 = vmatprep.subr.bf16.mxu0 0
      %431 = vmatpush1.bf16.msra.mxu0 0
      %432 = vmatprep.subr.bf16.mxu0 0
      %433 = vmatpush1.bf16.msra.mxu0 0
      %434 = vmatprep.subr.bf16.mxu0 0
      %435 = vmatpush1.bf16.msra.mxu0 0
      %436 = vmatprep.subr.bf16.mxu0 0
      %437 = vmatpush1.bf16.msra.mxu0 0
      %438 = vmatprep.subr.bf16.mxu0 0
      %439 = vmatpush1.bf16.msra.mxu0 0
      %440 = vmatprep.subr.bf16.mxu0 0
      %441 = vmatpush1.bf16.msra.mxu0 0
      %442 = vmatprep.subr.bf16.mxu0 0
      %443 = vmatpush1.bf16.msra.mxu0 0
      %444 = vmatprep.subr.bf16.mxu0 0
      %445 = vmatpush1.bf16.msra.mxu0 0
      %446 = vmatprep.subr.bf16.mxu0 0
      %447 = vmatpush1.bf16.msra.mxu0 0
      %448 = vmatprep.mubr.bf16.mxu0 0
      %449 = vmatmul.mubr.bf16.gmra.mrb[0].mxu0 %v408
      %v450 = vpop.f32.mrb[0].mxu0
      %v451 = vadd.f32 0.0, %v450
      %v452 = vpop.f32.mrb[0].mxu0
      %v453 = vadd.f32 0.0, %v452
      %v454 = vpop.f32.mrb[0].mxu0
      %v455 = vpop.f32.mrb[0].mxu0
      %456 = vdwg.mxu0
      %v457 = vadd.f32 %v373, %v451
      %v458 = vadd.f32 %v375, %v453
      %459 = vrot.lane.b32.xlu0 %v222, 1
      %v460 = vpop.permute.xlu0 %459
      %462 = vrot.lane.b32.xlu0 %v213, 1
      %v463 = vpop.permute.xlu0 %462
      %vm464 = vcmask 7168
      %v465 = vsel %vm464, %v463, %v460
      %v468 = vsel %vm464, %v460, %v463
      %v469 = vsel %vm219, 1, 0
      %v470 = vlaneseq
      %v471 = vshrl.u32 %v470, 7
      %v472 = vsub.s32 0, %v471
      %v473 = vrot.slane %v469, %v472
      %v474 = vlaneseq
      %v475 = vshrl.u32 %v474, 7
      %v476 = vsub.s32 1, %v475
      %v477 = vrot.slane %v469, %v476
      %vm478 = vcmp.eq.s32.totalorder %v473, 1
      %vm479 = vcmp.eq.s32.totalorder %v477, 1
      %v480 = vsel %vm478, %v468, 0.0
      %v481 = vsel %vm479, %v465, 0.0
      %s482 = scalar_lea.vmem %s1, 6
      %v483 = vld [vmem:[%s482] sm:$0x3]
      %v484 = vpack.c.bf16 %v480, %v480
      %v485 = vpack.c.bf16 %v481, %v481
      %v487 = vsel %vm277, %v483, 0
      %v490 = vsel %vm281, %v484, 0
      %v493 = vsel %vm281, %v485, 0
      %495 = vmatprep.subr.bf16.mxu0 %v493
      %496 = vmatpush1.bf16.msra.mxu0 %v490
      %497 = vmatprep.subr.bf16.mxu0 0
      %498 = vmatpush1.bf16.msra.mxu0 0
      %499 = vmatprep.subr.bf16.mxu0 0
      %500 = vmatpush1.bf16.msra.mxu0 0
      %501 = vmatprep.subr.bf16.mxu0 0
      %502 = vmatpush1.bf16.msra.mxu0 0
      %503 = vmatprep.subr.bf16.mxu0 0
      %504 = vmatpush1.bf16.msra.mxu0 0
      %505 = vmatprep.subr.bf16.mxu0 0
      %506 = vmatpush1.bf16.msra.mxu0 0
      %507 = vmatprep.subr.bf16.mxu0 0
      %508 = vmatpush1.bf16.msra.mxu0 0
      %509 = vmatprep.subr.bf16.mxu0 0
      %510 = vmatpush1.bf16.msra.mxu0 0
      %511 = vmatprep.subr.bf16.mxu0 0
      %512 = vmatpush1.bf16.msra.mxu0 0
      %513 = vmatprep.subr.bf16.mxu0 0
      %514 = vmatpush1.bf16.msra.mxu0 0
      %515 = vmatprep.subr.bf16.mxu0 0
      %516 = vmatpush1.bf16.msra.mxu0 0
      %517 = vmatprep.subr.bf16.mxu0 0
      %518 = vmatpush1.bf16.msra.mxu0 0
      %519 = vmatprep.subr.bf16.mxu0 0
      %520 = vmatpush1.bf16.msra.mxu0 0
      %521 = vmatprep.subr.bf16.mxu0 0
      %522 = vmatpush1.bf16.msra.mxu0 0
      %523 = vmatprep.subr.bf16.mxu0 0
      %524 = vmatpush1.bf16.msra.mxu0 0
      %525 = vmatprep.subr.bf16.mxu0 0
      %526 = vmatpush1.bf16.msra.mxu0 0
      %527 = vmatprep.mubr.bf16.mxu0 0
      %528 = vmatmul.mubr.bf16.gmra.mrb[0].mxu0 %v487
      %v529 = vpop.f32.mrb[0].mxu0
      %v530 = vadd.f32 0.0, %v529
      %v531 = vpop.f32.mrb[0].mxu0
      %v532 = vadd.f32 0.0, %v531
      %v533 = vpop.f32.mrb[0].mxu0
      %v534 = vpop.f32.mrb[0].mxu0
      %535 = vdwg.mxu0
      %v536 = vadd.f32 %v457, %v530
      %v537 = vadd.f32 %v458, %v532
      %s538 = scalar_lea.vmem %s1, 8
      %v539 = vld [vmem:[%s538] sm:$0x3]
      %v541 = vpack.c.bf16 %v213, %v213
      %v542 = vpack.c.bf16 %v222, %v222
      %v544 = vsel %vm277, %v539, 0
      %v547 = vsel %vm281, %v541, 0
      %v550 = vsel %vm281, %v542, 0
      %552 = vmatprep.subr.bf16.mxu0 %v550
      %553 = vmatpush1.bf16.msra.mxu0 %v547
      %554 = vmatprep.subr.bf16.mxu0 0
      %555 = vmatpush1.bf16.msra.mxu0 0
      %556 = vmatprep.subr.bf16.mxu0 0
      %557 = vmatpush1.bf16.msra.mxu0 0
      %558 = vmatprep.subr.bf16.mxu0 0
      %559 = vmatpush1.bf16.msra.mxu0 0
      %560 = vmatprep.subr.bf16.mxu0 0
      %561 = vmatpush1.bf16.msra.mxu0 0
      %562 = vmatprep.subr.bf16.mxu0 0
      %563 = vmatpush1.bf16.msra.mxu0 0
      %564 = vmatprep.subr.bf16.mxu0 0
      %565 = vmatpush1.bf16.msra.mxu0 0
      %566 = vmatprep.subr.bf16.mxu0 0
      %567 = vmatpush1.bf16.msra.mxu0 0
      %568 = vmatprep.subr.bf16.mxu0 0
      %569 = vmatpush1.bf16.msra.mxu0 0
      %570 = vmatprep.subr.bf16.mxu0 0
      %571 = vmatpush1.bf16.msra.mxu0 0
      %572 = vmatprep.subr.bf16.mxu0 0
      %573 = vmatpush1.bf16.msra.mxu0 0
      %574 = vmatprep.subr.bf16.mxu0 0
      %575 = vmatpush1.bf16.msra.mxu0 0
      %576 = vmatprep.subr.bf16.mxu0 0
      %577 = vmatpush1.bf16.msra.mxu0 0
      %578 = vmatprep.subr.bf16.mxu0 0
      %579 = vmatpush1.bf16.msra.mxu0 0
      %580 = vmatprep.subr.bf16.mxu0 0
      %581 = vmatpush1.bf16.msra.mxu0 0
      %582 = vmatprep.subr.bf16.mxu0 0
      %583 = vmatpush1.bf16.msra.mxu0 0
      %584 = vmatprep.mubr.bf16.mxu0 0
      %585 = vmatmul.mubr.bf16.gmra.mrb[0].mxu0 %v544
      %v586 = vpop.f32.mrb[0].mxu0
      %v587 = vadd.f32 0.0, %v586
      %v588 = vpop.f32.mrb[0].mxu0
      %v589 = vadd.f32 0.0, %v588
      %v590 = vpop.f32.mrb[0].mxu0
      %v591 = vpop.f32.mrb[0].mxu0
      %592 = vdwg.mxu0
      %v593 = vadd.f32 %v536, %v587
      %v594 = vadd.f32 %v537, %v589
      %595 = vrot.lane.b32.xlu0 %v213, 127
      %v596 = vpop.permute.xlu0 %595
      %597 = vrot.lane.b32.xlu0 %v222, 127
      %v598 = vpop.permute.xlu0 %597
      %vm599 = vcmask 1039360
      %v600 = vsel %vm599, %v596, %v598
      %v604 = vsel %vm599, %v598, %v596
      %v605 = vsel %vm220, 1, 0
      %v606 = vlaneseq
      %v607 = vshrl.u32 %v606, 7
      %v608 = vsub.s32 0, %v607
      %v609 = vrot.slane %v605, %v608
      %v610 = vlaneseq
      %v611 = vshrl.u32 %v610, 7
      %v612 = vsub.s32 1, %v611
      %v613 = vrot.slane %v605, %v612
      %vm614 = vcmp.eq.s32.totalorder %v609, 1
      %vm615 = vcmp.eq.s32.totalorder %v613, 1
      %v616 = vsel %vm614, %v600, 0.0
      %v617 = vsel %vm615, %v604, 0.0
      %s618 = scalar_lea.vmem %s1, 10
      %v619 = vld [vmem:[%s618] sm:$0x3]
      %v620 = vpack.c.bf16 %v616, %v616
      %v621 = vpack.c.bf16 %v617, %v617
      %v623 = vsel %vm277, %v619, 0
      %v626 = vsel %vm281, %v620, 0
      %v629 = vsel %vm281, %v621, 0
      %631 = vmatprep.subr.bf16.mxu0 %v629
      %632 = vmatpush1.bf16.msra.mxu0 %v626
      %633 = vmatprep.subr.bf16.mxu0 0
      %634 = vmatpush1.bf16.msra.mxu0 0
      %635 = vmatprep.subr.bf16.mxu0 0
      %636 = vmatpush1.bf16.msra.mxu0 0
      %637 = vmatprep.subr.bf16.mxu0 0
      %638 = vmatpush1.bf16.msra.mxu0 0
      %639 = vmatprep.subr.bf16.mxu0 0
      %640 = vmatpush1.bf16.msra.mxu0 0
      %641 = vmatprep.subr.bf16.mxu0 0
      %642 = vmatpush1.bf16.msra.mxu0 0
      %643 = vmatprep.subr.bf16.mxu0 0
      %644 = vmatpush1.bf16.msra.mxu0 0
      %645 = vmatprep.subr.bf16.mxu0 0
      %646 = vmatpush1.bf16.msra.mxu0 0
      %647 = vmatprep.subr.bf16.mxu0 0
      %648 = vmatpush1.bf16.msra.mxu0 0
      %649 = vmatprep.subr.bf16.mxu0 0
      %650 = vmatpush1.bf16.msra.mxu0 0
      %651 = vmatprep.subr.bf16.mxu0 0
      %652 = vmatpush1.bf16.msra.mxu0 0
      %653 = vmatprep.subr.bf16.mxu0 0
      %654 = vmatpush1.bf16.msra.mxu0 0
      %655 = vmatprep.subr.bf16.mxu0 0
      %656 = vmatpush1.bf16.msra.mxu0 0
      %657 = vmatprep.subr.bf16.mxu0 0
      %658 = vmatpush1.bf16.msra.mxu0 0
      %659 = vmatprep.subr.bf16.mxu0 0
      %660 = vmatpush1.bf16.msra.mxu0 0
      %661 = vmatprep.subr.bf16.mxu0 0
      %662 = vmatpush1.bf16.msra.mxu0 0
      %663 = vmatprep.mubr.bf16.mxu0 0
      %664 = vmatmul.mubr.bf16.gmra.mrb[0].mxu0 %v623
      %v665 = vpop.f32.mrb[0].mxu0
      %v666 = vadd.f32 0.0, %v665
      %v667 = vpop.f32.mrb[0].mxu0
      %v668 = vadd.f32 0.0, %v667
      %v669 = vpop.f32.mrb[0].mxu0
      %v670 = vpop.f32.mrb[0].mxu0
      %671 = vdwg.mxu0
      %v672 = vadd.f32 %v593, %v666
      %v673 = vadd.f32 %v594, %v668
      %674 = vrot.lane.b32.xlu0 %v213, 113
      %v675 = vpop.permute.xlu0 %674
      %676 = vrot.lane.b32.xlu0 %v222, 113
      %v677 = vpop.permute.xlu0 %676
      %vm678 = vcmask 924672
      %v679 = vsel %vm678, %v675, %v677
      %v683 = vsel %vm678, %v677, %v675
      %vm684 = vmand %vm218, %vm219
      %v685 = vsel %vm684, 1, 0
      %v686 = vlaneseq
      %v687 = vshrl.u32 %v686, 7
      %v688 = vsub.s32 0, %v687
      %v689 = vrot.slane %v685, %v688
      %v690 = vlaneseq
      %v691 = vshrl.u32 %v690, 7
      %v692 = vsub.s32 1, %v691
      %v693 = vrot.slane %v685, %v692
      %vm694 = vcmp.eq.s32.totalorder %v689, 1
      %vm695 = vcmp.eq.s32.totalorder %v693, 1
      %v696 = vsel %vm694, %v679, 0.0
      %v697 = vsel %vm695, %v683, 0.0
      %s698 = scalar_lea.vmem %s1, 12
      %v699 = vld [vmem:[%s698] sm:$0x3]
      %v700 = vpack.c.bf16 %v696, %v696
      %v701 = vpack.c.bf16 %v697, %v697
      %v703 = vsel %vm277, %v699, 0
      %v706 = vsel %vm281, %v700, 0
      %v709 = vsel %vm281, %v701, 0
      %711 = vmatprep.subr.bf16.mxu0 %v709
      %712 = vmatpush1.bf16.msra.mxu0 %v706
      %713 = vmatprep.subr.bf16.mxu0 0
      %714 = vmatpush1.bf16.msra.mxu0 0
      %715 = vmatprep.subr.bf16.mxu0 0
      %716 = vmatpush1.bf16.msra.mxu0 0
      %717 = vmatprep.subr.bf16.mxu0 0
      %718 = vmatpush1.bf16.msra.mxu0 0
      %719 = vmatprep.subr.bf16.mxu0 0
      %720 = vmatpush1.bf16.msra.mxu0 0
      %721 = vmatprep.subr.bf16.mxu0 0
      %722 = vmatpush1.bf16.msra.mxu0 0
      %723 = vmatprep.subr.bf16.mxu0 0
      %724 = vmatpush1.bf16.msra.mxu0 0
      %725 = vmatprep.subr.bf16.mxu0 0
      %726 = vmatpush1.bf16.msra.mxu0 0
      %727 = vmatprep.subr.bf16.mxu0 0
      %728 = vmatpush1.bf16.msra.mxu0 0
      %729 = vmatprep.subr.bf16.mxu0 0
      %730 = vmatpush1.bf16.msra.mxu0 0
      %731 = vmatprep.subr.bf16.mxu0 0
      %732 = vmatpush1.bf16.msra.mxu0 0
      %733 = vmatprep.subr.bf16.mxu0 0
      %734 = vmatpush1.bf16.msra.mxu0 0
      %735 = vmatprep.subr.bf16.mxu0 0
      %736 = vmatpush1.bf16.msra.mxu0 0
      %737 = vmatprep.subr.bf16.mxu0 0
      %738 = vmatpush1.bf16.msra.mxu0 0
      %739 = vmatprep.subr.bf16.mxu0 0
      %740 = vmatpush1.bf16.msra.mxu0 0
      %741 = vmatprep.subr.bf16.mxu0 0
      %742 = vmatpush1.bf16.msra.mxu0 0
      %743 = vmatprep.mubr.bf16.mxu0 0
      %744 = vmatmul.mubr.bf16.gmra.mrb[0].mxu0 %v703
      %v745 = vpop.f32.mrb[0].mxu0
      %v746 = vadd.f32 0.0, %v745
      %v747 = vpop.f32.mrb[0].mxu0
      %v748 = vadd.f32 0.0, %v747
      %v749 = vpop.f32.mrb[0].mxu0
      %v750 = vpop.f32.mrb[0].mxu0
      %751 = vdwg.mxu0
      %v752 = vadd.f32 %v672, %v746
      %v753 = vadd.f32 %v673, %v748
      %754 = vrot.lane.b32.xlu0 %v213, 112
      %v755 = vpop.permute.xlu0 %754
      %756 = vrot.lane.b32.xlu0 %v222, 112
      %v757 = vpop.permute.xlu0 %756
      %vm758 = vcmask 916480
      %v759 = vsel %vm758, %v755, %v757
      %v763 = vsel %vm758, %v757, %v755
      %v764 = vsel %vm218, 1, 0
      %v765 = vlaneseq
      %v766 = vshrl.u32 %v765, 7
      %v767 = vsub.s32 0, %v766
      %v768 = vrot.slane %v764, %v767
      %v769 = vlaneseq
      %v770 = vshrl.u32 %v769, 7
      %v771 = vsub.s32 1, %v770
      %v772 = vrot.slane %v764, %v771
      %vm773 = vcmp.eq.s32.totalorder %v768, 1
      %vm774 = vcmp.eq.s32.totalorder %v772, 1
      %v775 = vsel %vm773, %v759, 0.0
      %v776 = vsel %vm774, %v763, 0.0
      %s777 = scalar_lea.vmem %s1, 14
      %v778 = vld [vmem:[%s777] sm:$0x3]
      %v779 = vpack.c.bf16 %v775, %v775
      %v780 = vpack.c.bf16 %v776, %v776
      %v782 = vsel %vm277, %v778, 0
      %v785 = vsel %vm281, %v779, 0
      %v788 = vsel %vm281, %v780, 0
      %790 = vmatprep.subr.bf16.mxu0 %v788
      %791 = vmatpush1.bf16.msra.mxu0 %v785
      %792 = vmatprep.subr.bf16.mxu0 0
      %793 = vmatpush1.bf16.msra.mxu0 0
      %794 = vmatprep.subr.bf16.mxu0 0
      %795 = vmatpush1.bf16.msra.mxu0 0
      %796 = vmatprep.subr.bf16.mxu0 0
      %797 = vmatpush1.bf16.msra.mxu0 0
      %798 = vmatprep.subr.bf16.mxu0 0
      %799 = vmatpush1.bf16.msra.mxu0 0
      %800 = vmatprep.subr.bf16.mxu0 0
      %801 = vmatpush1.bf16.msra.mxu0 0
      %802 = vmatprep.subr.bf16.mxu0 0
      %803 = vmatpush1.bf16.msra.mxu0 0
      %804 = vmatprep.subr.bf16.mxu0 0
      %805 = vmatpush1.bf16.msra.mxu0 0
      %806 = vmatprep.subr.bf16.mxu0 0
      %807 = vmatpush1.bf16.msra.mxu0 0
      %808 = vmatprep.subr.bf16.mxu0 0
      %809 = vmatpush1.bf16.msra.mxu0 0
      %810 = vmatprep.subr.bf16.mxu0 0
      %811 = vmatpush1.bf16.msra.mxu0 0
      %812 = vmatprep.subr.bf16.mxu0 0
      %813 = vmatpush1.bf16.msra.mxu0 0
      %814 = vmatprep.subr.bf16.mxu0 0
      %815 = vmatpush1.bf16.msra.mxu0 0
      %816 = vmatprep.subr.bf16.mxu0 0
      %817 = vmatpush1.bf16.msra.mxu0 0
      %818 = vmatprep.subr.bf16.mxu0 0
      %819 = vmatpush1.bf16.msra.mxu0 0
      %820 = vmatprep.subr.bf16.mxu0 0
      %821 = vmatpush1.bf16.msra.mxu0 0
      %822 = vmatprep.mubr.bf16.mxu0 0
      %823 = vmatmul.mubr.bf16.gmra.mrb[0].mxu0 %v782
      %v824 = vpop.f32.mrb[0].mxu0
      %v825 = vadd.f32 0.0, %v824
      %v826 = vpop.f32.mrb[0].mxu0
      %v827 = vadd.f32 0.0, %v826
      %v828 = vpop.f32.mrb[0].mxu0
      %v829 = vpop.f32.mrb[0].mxu0
      %830 = vdwg.mxu0
      %v831 = vadd.f32 %v752, %v825
      %v832 = vadd.f32 %v753, %v827
      %833 = vrot.lane.b32.xlu0 %v213, 111
      %v834 = vpop.permute.xlu0 %833
      %835 = vrot.lane.b32.xlu0 %v222, 111
      %v836 = vpop.permute.xlu0 %835
      %vm837 = vcmask 908288
      %v838 = vsel %vm837, %v834, %v836
      %v842 = vsel %vm837, %v836, %v834
      %vm843 = vmand %vm218, %vm220
      %v844 = vsel %vm843, 1, 0
      %v845 = vlaneseq
      %v846 = vshrl.u32 %v845, 7
      %v847 = vsub.s32 0, %v846
      %v848 = vrot.slane %v844, %v847
      %v849 = vlaneseq
      %v850 = vshrl.u32 %v849, 7
      %v851 = vsub.s32 1, %v850
      %v852 = vrot.slane %v844, %v851
      %vm853 = vcmp.eq.s32.totalorder %v848, 1
      %vm854 = vcmp.eq.s32.totalorder %v852, 1
      %v855 = vsel %vm853, %v838, 0.0
      %v856 = vsel %vm854, %v842, 0.0
      %s857 = scalar_lea.vmem %s1, 16
      %v858 = vld [vmem:[%s857] sm:$0x3]
      %v859 = vpack.c.bf16 %v855, %v855
      %v860 = vpack.c.bf16 %v856, %v856
      %v862 = vsel %vm277, %v858, 0
      %v865 = vsel %vm281, %v859, 0
      %v868 = vsel %vm281, %v860, 0
      %870 = vmatprep.subr.bf16.mxu0 %v868
      %871 = vmatpush1.bf16.msra.mxu0 %v865
      %872 = vmatprep.subr.bf16.mxu0 0
      %873 = vmatpush1.bf16.msra.mxu0 0
      %874 = vmatprep.subr.bf16.mxu0 0
      %875 = vmatpush1.bf16.msra.mxu0 0
      %876 = vmatprep.subr.bf16.mxu0 0
      %877 = vmatpush1.bf16.msra.mxu0 0
      %878 = vmatprep.subr.bf16.mxu0 0
      %879 = vmatpush1.bf16.msra.mxu0 0
      %880 = vmatprep.subr.bf16.mxu0 0
      %881 = vmatpush1.bf16.msra.mxu0 0
      %882 = vmatprep.subr.bf16.mxu0 0
      %883 = vmatpush1.bf16.msra.mxu0 0
      %884 = vmatprep.subr.bf16.mxu0 0
      %885 = vmatpush1.bf16.msra.mxu0 0
      %886 = vmatprep.subr.bf16.mxu0 0
      %887 = vmatpush1.bf16.msra.mxu0 0
      %888 = vmatprep.subr.bf16.mxu0 0
      %889 = vmatpush1.bf16.msra.mxu0 0
      %890 = vmatprep.subr.bf16.mxu0 0
      %891 = vmatpush1.bf16.msra.mxu0 0
      %892 = vmatprep.subr.bf16.mxu0 0
      %893 = vmatpush1.bf16.msra.mxu0 0
      %894 = vmatprep.subr.bf16.mxu0 0
      %895 = vmatpush1.bf16.msra.mxu0 0
      %896 = vmatprep.subr.bf16.mxu0 0
      %897 = vmatpush1.bf16.msra.mxu0 0
      %898 = vmatprep.subr.bf16.mxu0 0
      %899 = vmatpush1.bf16.msra.mxu0 0
      %900 = vmatprep.subr.bf16.mxu0 0
      %901 = vmatpush1.bf16.msra.mxu0 0
      %902 = vmatprep.mubr.bf16.mxu0 0
      %903 = vmatmul.mubr.bf16.gmra.mrb[0].mxu0 %v862
      %v904 = vpop.f32.mrb[0].mxu0
      %v905 = vadd.f32 0.0, %v904
      %v906 = vpop.f32.mrb[0].mxu0
      %v907 = vadd.f32 0.0, %v906
      %v908 = vpop.f32.mrb[0].mxu0
      %v909 = vpop.f32.mrb[0].mxu0
      %910 = vdwg.mxu0
      %v911 = vadd.f32 %v831, %v905
      %v912 = vadd.f32 %v832, %v907
      %v915 = vcombine.low %v911, %v912
      %917 = vst [vmem:[%s206] sm:$0xff] %v915
      %vm918 = vcmask 1043456
      %v919 = vsel %vm918, %v911, 0.0
      %v920 = vsel %vm918, %v912, 0.0
      %v921 = vadd.f32 %v919, %v920
      %922 = vadd.xlane.f32.xlu0 %v921
      %v923 = vpop.xlane.xlu0 %922
      %vm924 = vcmask 3072
      %925 = vst.msk [vmem:[%s211] sm:$0xf] %vm924, %v923
      %v926 = vmul.f32 %v911, %v911
      %v927 = vmul.f32 %v912, %v912
      %v928 = vsel %vm918, %v926, 0.0
      %v929 = vsel %vm918, %v927, 0.0
      %v930 = vadd.f32 %v928, %v929
      %931 = vadd.xlane.f32.xlu0 %v930
      %v932 = vpop.xlane.xlu0 %931
      %vm933 = vcmask 11272
      %934 = vst.msk [vmem:[%s211] sm:$0xf] %vm933, %v932
      %s935 = smul.u32 2, %s16
      %p936 = scmp.lt.s32.totalorder %s935, 3
      %s937 = scalar_select %p936, %s935, 3
      %s938 = smul.addr %s937, 4
      %s939 = scalar_lea.vmem %s3, %s938
      %p940 = scmp.lt.s32.totalorder %s16, 1
      %s941 = scalar_select %p940, %s16, 1
      %s942 = smul.addr %s941, 4
      %s943 = scalar_lea.vmem %s4, %s942
      // Predicated region
      $region33: #{residual_block_pallas.2} parent=31 // pred_check
        %p944 = pneg %p102
      $region34: #{residual_block_pallas.2} parent=31 // pred_check_branch
        %946 = sbr.rel (%p944) target = $region36
      $region35: #{residual_block_pallas.2} parent=31 // pred_region
        %s947 = smul.u32 2, %s16
      $region36: #{residual_block_pallas.2} parent=31 // pred_fallthru
        _
      // Predicated region
      $region37: #{residual_block_pallas.2} parent=31 // pred_check
        %p948 = pneg %p128
      $region38: #{residual_block_pallas.2} parent=31 // pred_check_branch
        %950 = sbr.rel (%p948) target = $region40
      $region39: #{residual_block_pallas.2} parent=31 // pred_region
        _
      $region40: #{residual_block_pallas.2} parent=31 // pred_fallthru
        _
    $region32: #{residual_block_pallas.2} parent=5 // pred_fallthru
      _
    %p951 = scmp.le.s32.totalorder 2, %s11
    // Predicated region
    $region41: #{residual_block_pallas.2} parent=5 // pred_check
      %p952 = pneg %p951
    $region42: #{residual_block_pallas.2} parent=5 // pred_check_branch
      %954 = sbr.rel (%p952) target = $region44
    $region43: #{residual_block_pallas.2} parent=5 // pred_region
      %s955 = ssub.s32 %s11, 2
      // Predicated region
      $region45: #{residual_block_pallas.2} parent=43 // pred_check
        %p956 = pneg %p108
      $region46: #{residual_block_pallas.2} parent=43 // pred_check_branch
        %958 = sbr.rel (%p956) target = $region48
      $region47: #{residual_block_pallas.2} parent=43 // pred_region
        %s959 = smul.u32 2, %s17
        %p960 = scmp.lt.s32.totalorder %s959, 3
        %s961 = scalar_select %p960, %s959, 3
        %s962 = smul.addr %s961, 4
        %s963 = scalar_lea.vmem %s3, %s962
      $region48: #{residual_block_pallas.2} parent=43 // pred_fallthru
        _
      // Predicated region
      $region49: #{residual_block_pallas.2} parent=43 // pred_check
        %p964 = pneg %p134
      $region50: #{residual_block_pallas.2} parent=43 // pred_check_branch
        %966 = sbr.rel (%p964) target = $region52
      $region51: #{residual_block_pallas.2} parent=43 // pred_region
        %p967 = scmp.lt.s32.totalorder %s17, 1
        %s968 = scalar_select %p967, %s17, 1
        %s969 = smul.addr %s968, 4
        %s970 = scalar_lea.vmem %s4, %s969
      $region52: #{residual_block_pallas.2} parent=43 // pred_fallthru
        _
    $region44: #{residual_block_pallas.2} parent=5 // pred_fallthru
      _
  $region6: #{residual_block_pallas.2} parent=0 // loop_footer
    %s15 = sadd.s32 1, %s11
  $region7: #{residual_block_pallas.2} parent=0 // loop_footer_branch
    %10 = sbr.rel target = $region3
  $region8: #{residual_block_pallas.2} parent=0 // loop_exit
    _

// kernel: residual_block_pallas.3
$region0: #{residual_block_pallas.3}
  #allocation0 [shape = 'u32[]', space=smem, size = 0x4, offset = 0x4, fixed_abs, tag = 'smem constant byte address 0x4 - core index']
  #allocation1 [shape = 'u32[144,128]{1,0:T(1,128)}', space=vmem, size = 0x12000, scoped, tag = 'internal scratch']
  %s0 = inlined_call_operand.vmem [shape: f32[4,512], index: 0, kind: input, shape index: {}]
  %s1 = inlined_call_operand.vmem [shape: f32[4,1], index: 1, kind: input, shape index: {}]
  %s2 = inlined_call_operand.vmem [shape: f32[4,1], index: 2, kind: input, shape index: {}]
  %s3 = inlined_call_operand.vmem [shape: bf16[9,4,4], index: 3, kind: input, shape index: {}]
  %s4 = inlined_call_operand.vmem [shape: s32[2,256], index: 4, kind: input, shape index: {}]
  %s5 = inlined_call_operand.vmem [shape: f32[4,512], index: 5, kind: output, shape index: {0}]
  %s6 = inlined_call_operand.vmem [shape: f32[2,4,2], index: 6, kind: output, shape index: {1}]
  %7 = xla_tuple %s5, %s6
  %s8 = sld [smem:[#allocation0]]
  $region61: #{residual_block_pallas.3} parent=0
    _
  %s10 = ssub.s32 1, %s8
  %s11 = scalar_select 0, %s10, %s8
  loop: start=0, step=1, limit=4
  $region2: #{residual_block_pallas.3} parent=0 // loop_pre_header
    _
  $region3: #{residual_block_pallas.3} parent=0 // loop_header
    %s13 = sphi 0, %s17
    %p14 = scmp.ge.s32.totalorder %s13, 4
    %s23 = sphi 0, %s25
    %s26 = sphi 0, %s23
    %s27 = sphi 0, %s26
    %s43 = sphi 0, %s27
    %s47 = sphi 0, %s47
    %s49 = sphi 0, %s47
    %s50 = sphi 0, %s49
    %s64 = sphi 0, %s50
    %s68 = sphi 0, %s68
    %s70 = sphi 0, %s68
    %s71 = sphi 0, %s70
    %s85 = sphi 0, %s71
    %s89 = sphi 0, %s89
    %s91 = sphi 0, %s89
    %s92 = sphi 0, %s91
    %s106 = sphi 0, %s92
    %s110 = sphi 0, %s110
    %s112 = sphi 0, %s110
    %s113 = sphi 0, %s112
    %s127 = sphi 0, %s113
    %s133 = sphi 0, %s135
    %s136 = sphi 0, %s133
    %s137 = sphi 0, %s136
    %s153 = sphi 0, %s137
    %s159 = sphi 0, %s161
    %s162 = sphi 0, %s159
    %s163 = sphi 0, %s162
    %s179 = sphi 0, %s163
  $region4: #{residual_block_pallas.3} parent=0 // loop_header_branch
    %16 = sbr.rel (%p14) target = $region8
  $region5: #{residual_block_pallas.3} parent=0 // loop_body
    %s18 = ssub.s32 %s13, 1
    %s19 = ssub.s32 %s13, 2
    %s20 = sadd.s32 %s13, 1
    %s21 = ssub.s32 %s13, %s20
    %p22 = scmp.eq.s32.totalorder %s21, 0
    %s24 = sadd.s32 %s23, 1
    %s25 = scalar_select %p22, %s23, %s24
    %p28 = pneg %p22
    %p29 = scmp.eq.s32.totalorder %s13, 1
    %p30 = por %p28, %p29
    %p31 = scmp.ne.s32.totalorder %s23, %s26
    %p32 = scmp.eq.s32.totalorder %s13, 0
    %p33 = por %p31, %p32
    %p34 = scmp.ne.s32.totalorder %s23, %s26
    %p35 = scmp.eq.s32.totalorder %s18, 1
    %p36 = por %p34, %p35
    %p37 = scmp.ne.s32.totalorder %s26, %s27
    %p38 = scmp.eq.s32.totalorder %s18, 0
    %p39 = por %p37, %p38
    %p40 = scmp.ne.s32.totalorder %s26, %s27
    %p41 = scmp.eq.s32.totalorder %s19, 1
    %p42 = por %p40, %p41
    %p44 = scmp.ne.s32.totalorder %s27, %s43
    %p45 = scmp.eq.s32.totalorder %s19, 0
    %p46 = por %p44, %p45
    %s48 = sadd.s32 %s47, 1
    %p51 = scmp.eq.s32.totalorder %s13, 1
    %p52 = scmp.ne.s32.totalorder %s47, %s49
    %p53 = scmp.eq.s32.totalorder %s13, 0
    %p54 = por %p52, %p53
    %p55 = scmp.ne.s32.totalorder %s47, %s49
    %p56 = scmp.eq.s32.totalorder %s18, 1
    %p57 = por %p55, %p56
    %p58 = scmp.ne.s32.totalorder %s49, %s50
    %p59 = scmp.eq.s32.totalorder %s18, 0
    %p60 = por %p58, %p59
    %p61 = scmp.ne.s32.totalorder %s49, %s50
    %p62 = scmp.eq.s32.totalorder %s19, 1
    %p63 = por %p61, %p62
    %p65 = scmp.ne.s32.totalorder %s50, %s64
    %p66 = scmp.eq.s32.totalorder %s19, 0
    %p67 = por %p65, %p66
    %s69 = sadd.s32 %s68, 1
    %p72 = scmp.eq.s32.totalorder %s13, 1
    %p73 = scmp.ne.s32.totalorder %s68, %s70
    %p74 = scmp.eq.s32.totalorder %s13, 0
    %p75 = por %p73, %p74
    %p76 = scmp.ne.s32.totalorder %s68, %s70
    %p77 = scmp.eq.s32.totalorder %s18, 1
    %p78 = por %p76, %p77
    %p79 = scmp.ne.s32.totalorder %s70, %s71
    %p80 = scmp.eq.s32.totalorder %s18, 0
    %p81 = por %p79, %p80
    %p82 = scmp.ne.s32.totalorder %s70, %s71
    %p83 = scmp.eq.s32.totalorder %s19, 1
    %p84 = por %p82, %p83
    %p86 = scmp.ne.s32.totalorder %s71, %s85
    %p87 = scmp.eq.s32.totalorder %s19, 0
    %p88 = por %p86, %p87
    %s90 = sadd.s32 %s89, 1
    %p93 = scmp.eq.s32.totalorder %s13, 1
    %p94 = scmp.ne.s32.totalorder %s89, %s91
    %p95 = scmp.eq.s32.totalorder %s13, 0
    %p96 = por %p94, %p95
    %p97 = scmp.ne.s32.totalorder %s89, %s91
    %p98 = scmp.eq.s32.totalorder %s18, 1
    %p99 = por %p97, %p98
    %p100 = scmp.ne.s32.totalorder %s91, %s92
    %p101 = scmp.eq.s32.totalorder %s18, 0
    %p102 = por %p100, %p101
    %p103 = scmp.ne.s32.totalorder %s91, %s92
    %p104 = scmp.eq.s32.totalorder %s19, 1
    %p105 = por %p103, %p104
    %p107 = scmp.ne.s32.totalorder %s92, %s106
    %p108 = scmp.eq.s32.totalorder %s19, 0
    %p109 = por %p107, %p108
    %s111 = sadd.s32 %s110, 1
    %p114 = scmp.eq.s32.totalorder %s13, 1
    %p115 = scmp.ne.s32.totalorder %s110, %s112
    %p116 = scmp.eq.s32.totalorder %s13, 0
    %p117 = por %p115, %p116
    %p118 = scmp.ne.s32.totalorder %s110, %s112
    %p119 = scmp.eq.s32.totalorder %s18, 1
    %p120 = por %p118, %p119
    %p121 = scmp.ne.s32.totalorder %s112, %s113
    %p122 = scmp.eq.s32.totalorder %s18, 0
    %p123 = por %p121, %p122
    %p124 = scmp.ne.s32.totalorder %s112, %s113
    %p125 = scmp.eq.s32.totalorder %s19, 1
    %p126 = por %p124, %p125
    %p128 = scmp.ne.s32.totalorder %s113, %s127
    %p129 = scmp.eq.s32.totalorder %s19, 0
    %p130 = por %p128, %p129
    %s131 = ssub.s32 %s13, %s20
    %p132 = scmp.eq.s32.totalorder %s131, 0
    %s134 = sadd.s32 %s133, 1
    %s135 = scalar_select %p132, %s133, %s134
    %p138 = pneg %p132
    %p139 = scmp.eq.s32.totalorder %s13, 1
    %p140 = por %p138, %p139
    %p141 = scmp.ne.s32.totalorder %s133, %s136
    %p142 = scmp.eq.s32.totalorder %s13, 0
    %p143 = por %p141, %p142
    %p144 = scmp.ne.s32.totalorder %s133, %s136
    %p145 = scmp.eq.s32.totalorder %s18, 1
    %p146 = por %p144, %p145
    %p147 = scmp.ne.s32.totalorder %s136, %s137
    %p148 = scmp.eq.s32.totalorder %s18, 0
    %p149 = por %p147, %p148
    %p150 = scmp.ne.s32.totalorder %s136, %s137
    %p151 = scmp.eq.s32.totalorder %s19, 1
    %p152 = por %p150, %p151
    %p154 = scmp.ne.s32.totalorder %s137, %s153
    %p155 = scmp.eq.s32.totalorder %s19, 0
    %p156 = por %p154, %p155
    %s157 = ssub.s32 %s13, %s20
    %p158 = scmp.eq.s32.totalorder %s157, 0
    %s160 = sadd.s32 %s159, 1
    %s161 = scalar_select %p158, %s159, %s160
    %p164 = pneg %p158
    %p165 = scmp.eq.s32.totalorder %s13, 1
    %p166 = por %p164, %p165
    %p167 = scmp.ne.s32.totalorder %s159, %s162
    %p168 = scmp.eq.s32.totalorder %s13, 0
    %p169 = por %p167, %p168
    %p170 = scmp.ne.s32.totalorder %s159, %s162
    %p171 = scmp.eq.s32.totalorder %s18, 1
    %p172 = por %p170, %p171
    %p173 = scmp.ne.s32.totalorder %s162, %s163
    %p174 = scmp.eq.s32.totalorder %s18, 0
    %p175 = por %p173, %p174
    %p176 = scmp.ne.s32.totalorder %s162, %s163
    %p177 = scmp.eq.s32.totalorder %s19, 1
    %p178 = por %p176, %p177
    %p180 = scmp.ne.s32.totalorder %s163, %s179
    %p181 = scmp.eq.s32.totalorder %s19, 0
    %p182 = por %p180, %p181
    %p183 = scmp.le.s32.totalorder 1, %s13
    %p184 = scmp.lt.s32.totalorder %s13, 3
    %p185 = pnand %p183, %p184
    %p186 = pneg %p185
    // Predicated region
    $region9: #{residual_block_pallas.3} parent=5 // pred_check
      _
    $region10: #{residual_block_pallas.3} parent=5 // pred_check_branch
      %188 = sbr.rel (%p185) target = $region12
    $region11: #{residual_block_pallas.3} parent=5 // pred_region
      %s189 = ssub.s32 %s13, 1
      // Predicated region
      $region13: #{residual_block_pallas.3} parent=11 // pred_check
        %p190 = pneg %p60
      $region14: #{residual_block_pallas.3} parent=11 // pred_check_branch
        %192 = sbr.rel (%p190) target = $region16
      $region15: #{residual_block_pallas.3} parent=11 // pred_region
        _
      $region16: #{residual_block_pallas.3} parent=11 // pred_fallthru
        _
      // Predicated region
      $region17: #{residual_block_pallas.3} parent=11 // pred_check
        %p193 = pneg %p81
      $region18: #{residual_block_pallas.3} parent=11 // pred_check_branch
        %195 = sbr.rel (%p193) target = $region20
      $region19: #{residual_block_pallas.3} parent=11 // pred_region
        _
      $region20: #{residual_block_pallas.3} parent=11 // pred_fallthru
        _
      // Predicated region
      $region21: #{residual_block_pallas.3} parent=11 // pred_check
        %p196 = pneg %p102
      $region22: #{residual_block_pallas.3} parent=11 // pred_check_branch
        %198 = sbr.rel (%p196) target = $region24
      $region23: #{residual_block_pallas.3} parent=11 // pred_region
        _
      $region24: #{residual_block_pallas.3} parent=11 // pred_fallthru
        _
      // Predicated region
      $region25: #{residual_block_pallas.3} parent=11 // pred_check
        %p199 = pneg %p123
      $region26: #{residual_block_pallas.3} parent=11 // pred_check_branch
        %201 = sbr.rel (%p199) target = $region28
      $region27: #{residual_block_pallas.3} parent=11 // pred_region
        _
      $region28: #{residual_block_pallas.3} parent=11 // pred_fallthru
        _
    $region12: #{residual_block_pallas.3} parent=5 // pred_fallthru
      _
    %p202 = scmp.lt.s32.totalorder %s13, 2
    // Predicated region
    $region29: #{residual_block_pallas.3} parent=5 // pred_check
      %p203 = pneg %p202
    $region30: #{residual_block_pallas.3} parent=5 // pred_check_branch
      %205 = sbr.rel (%p203) target = $region32
    $region31: #{residual_block_pallas.3} parent=5 // pred_region
      // Predicated region
      $region33: #{residual_block_pallas.3} parent=31 // pred_check
        %p206 = pneg %p33
      $region34: #{residual_block_pallas.3} parent=31 // pred_check_branch
        %208 = sbr.rel (%p206) target = $region36
      $region35: #{residual_block_pallas.3} parent=31 // pred_region
        %s209 = smul.u32 2, %s13
        %p210 = scmp.lt.s32.totalorder %s209, 3
        %s211 = scalar_select %p210, %s209, 3
        %s212 = smul.addr %s211, 4
        %s213 = scalar_lea.vmem %s0, %s212
        %s214 = smul.u32 2, %s13
      $region36: #{residual_block_pallas.3} parent=31 // pred_fallthru
        _
    $region32: #{residual_block_pallas.3} parent=5 // pred_fallthru
      _
    %p215 = scmp.le.s32.totalorder 1, %s13
    %p216 = scmp.lt.s32.totalorder %s13, 3
    %p217 = pnand %p215, %p216
    %p218 = pneg %p217
    // Predicated region
    $region37: #{residual_block_pallas.3} parent=5 // pred_check
      _
    $region38: #{residual_block_pallas.3} parent=5 // pred_check_branch
      %220 = sbr.rel (%p217) target = $region40
    $region39: #{residual_block_pallas.3} parent=5 // pred_region
      %s221 = ssub.s32 %s13, 1
      %s222 = smul.u32 2, %s18
      %p223 = scmp.lt.s32.totalorder %s222, 3
      %s224 = scalar_select %p223, %s222, 3
      %s225 = smul.addr %s224, 4
      %s226 = scalar_lea.vmem %s0, %s225
      %p227 = pneg %p39
      %p228 = pneg %p36
      %p229 = pneg %p60
      %p230 = pneg %p57
      %p231 = pneg %p81
      %p232 = pneg %p78
      %p233 = pneg %p102
      %p234 = pneg %p99
      %p235 = pneg %p123
      %p236 = pneg %p120
      %p237 = pneg %p149
      %p238 = pneg %p146
      %s239 = smul.u32 2, %s18
      %p240 = scmp.lt.s32.totalorder %s239, 3
      %s241 = scalar_select %p240, %s239, 3
      %s242 = smul.addr %s241, 4
      %s243 = scalar_lea.vmem %s5, %s242
      %p244 = pneg %p175
      %p245 = pneg %p172
      %p246 = scmp.lt.s32.totalorder %s18, 1
      %s247 = scalar_select %p246, %s18, 1
      %s248 = smul.addr %s247, 4
      %s249 = scalar_lea.vmem %s6, %s248
      %s250 = smul.u32 2, %s18
      %p251 = scmp.lt.s32.totalorder %s250, 3
      %s252 = scalar_select %p251, %s250, 3
      %s253 = smul.addr %s252, 4
      %s254 = scalar_lea.vmem %s0, %s253
      %s255 = smul.u32 2, %s18
      %s256 = smul.u32 2, %s18
      %p257 = scmp.lt.s32.totalorder %s256, 3
      %s258 = scalar_select %p257, %s256, 3
      %s259 = smul.addr %s258, 4
      %s260 = scalar_lea.vmem %s5, %s259
      %s261 = smul.u32 2, %s18
      %p262 = scmp.lt.s32.totalorder %s18, 1
      %s263 = scalar_select %p262, %s18, 1
      %s264 = smul.addr %s263, 4
      %s265 = scalar_lea.vmem %s6, %s264
      %v267 = vld [vmem:[%s254] sm:$0xff]
      %v268 = vld [vmem:[%s1] sm:$0xf]
      %270 = vset.pattern.permute.xlu0 0
      %271 = vperm.xlu0 %270, %v268
      %v272 = vpop.permute.xlu0 %271
      %v274 = vunpack.c.l.s4 839922192
      %v275 = vunpack.c.0.s8 %v274
      %v276 = vlaneseq
      %v277 = vshrl.u32 %v276, 7
      %v278 = vsub.s32 %v275, %v277
      %v279 = vrot.slane %v272, %v278
      %v281 = vmul.f32 %v267, %v279
      %v282 = vld [vmem:[%s2] sm:$0xf]
      %284 = vset.pattern.permute.xlu0 0
      %285 = vperm.xlu0 %284, %v282
      %v286 = vpop.permute.xlu0 %285
      %v288 = vunpack.c.l.s4 839922192
      %v289 = vunpack.c.0.s8 %v288
      %v290 = vlaneseq
      %v291 = vshrl.u32 %v290, 7
      %v292 = vsub.s32 %v289, %v291
      %v293 = vrot.slane %v286, %v292
      %v295 = vadd.f32 %v281, %v293
      %v296 = vmax.f32 %v295, 0.0
      %v297 = vld [vmem:[%s4] ss:$2 sm:$0x3]
      %s298 = scalar_lea.vmem %s4, 1
      %v299 = vld [vmem:[%s298] ss:$2 sm:$0x3]
      %vm300 = vcmp.ge.s32.totalorder %v297, 1
      %vm301 = vcmp.le.s32.totalorder %v297, 14
      %vm302 = vcmp.ge.s32.totalorder %v299, 1
      %vm303 = vcmp.le.s32.totalorder %v299, 14
      %v305 = vcombine.high %v296, %v296
      %306 = vrot.lane.b32.xlu0 %v305, 17
      %v307 = vpop.permute.xlu0 %306
      %309 = vrot.lane.b32.xlu0 %v296, 17
      %v310 = vpop.permute.xlu0 %309
      %vm311 = vcmask 138240
      %v312 = vsel %vm311, %v310, %v307
      %v315 = vsel %vm311, %v307, %v310
      %vm316 = vmand %vm300, %vm302
      %v317 = vsel %vm316, 1, 0
      %v318 = vlaneseq
      %v319 = vshrl.u32 %v318, 7
      %v320 = vsub.s32 0, %v319
      %v321 = vrot.slane %v317, %v320
      %v322 = vlaneseq
      %v323 = vshrl.u32 %v322, 7
      %v324 = vsub.s32 1, %v323
      %v325 = vrot.slane %v317, %v324
      %vm326 = vcmp.eq.s32.totalorder %v321, 1
      %vm327 = vcmp.eq.s32.totalorder %v325, 1
      %v328 = vsel %vm326, %v315, 0.0
      %v329 = vsel %vm327, %v312, 0.0
      %v330 = vld [vmem:[%s3] sm:$0x3]
      %v331 = vpack.c.bf16 %v328, %v328
      %v332 = vpack.c.bf16 %v329, %v329
      %333 = vrot.lane.b32.xlu0 %v305, 16
      %v334 = vpop.permute.xlu0 %333
      %336 = vrot.lane.b32.xlu0 %v296, 16
      %v337 = vpop.permute.xlu0 %336
      %vm338 = vcmask 130048
      %v339 = vsel %vm338, %v337, %v334
      %v342 = vsel %vm338, %v334, %v337
      %v343 = vsel %vm300, 1, 0
      %v344 = vlaneseq
      %v345 = vshrl.u32 %v344, 7
      %v346 = vsub.s32 0, %v345
      %v347 = vrot.slane %v343, %v346
      %v348 = vlaneseq
      %v349 = vshrl.u32 %v348, 7
      %v350 = vsub.s32 1, %v349
      %v351 = vrot.slane %v343, %v350
      %vm352 = vcmp.eq.s32.totalorder %v347, 1
      %vm353 = vcmp.eq.s32.totalorder %v351, 1
      %v354 = vsel %vm352, %v342, 0.0
      %v355 = vsel %vm353, %v339, 0.0
      %s356 = scalar_lea.vmem %s3, 2
      %v357 = vld [vmem:[%s356] sm:$0x3]
      %v358 = vpack.c.bf16 %v354, %v354
      %v359 = vpack.c.bf16 %v355, %v355
      %vm360 = vcmask 31744
      %v362 = vsel %vm360, %v357, 0
      %vm364 = vcmask 1041408
      %v366 = vsel %vm364, %v358, 0
      %v369 = vsel %vm364, %v359, 0
      %371 = vmatprep.subr.bf16.mxu0 %v369
      %372 = vmatpush1.bf16.msra.mxu0 %v366
      %373 = vmatprep.subr.bf16.mxu0 0
      %374 = vmatpush1.bf16.msra.mxu0 0
      %375 = vmatprep.subr.bf16.mxu0 0
      %376 = vmatpush1.bf16.msra.mxu0 0
      %377 = vmatprep.subr.bf16.mxu0 0
      %378 = vmatpush1.bf16.msra.mxu0 0
      %379 = vmatprep.subr.bf16.mxu0 0
      %380 = vmatpush1.bf16.msra.mxu0 0
      %381 = vmatprep.subr.bf16.mxu0 0
      %382 = vmatpush1.bf16.msra.mxu0 0
      %383 = vmatprep.subr.bf16.mxu0 0
      %384 = vmatpush1.bf16.msra.mxu0 0
      %385 = vmatprep.subr.bf16.mxu0 0
      %386 = vmatpush1.bf16.msra.mxu0 0
      %387 = vmatprep.subr.bf16.mxu0 0
      %388 = vmatpush1.bf16.msra.mxu0 0
      %389 = vmatprep.subr.bf16.mxu0 0
      %390 = vmatpush1.bf16.msra.mxu0 0
      %391 = vmatprep.subr.bf16.mxu0 0
      %392 = vmatpush1.bf16.msra.mxu0 0
      %393 = vmatprep.subr.bf16.mxu0 0
      %394 = vmatpush1.bf16.msra.mxu0 0
      %395 = vmatprep.subr.bf16.mxu0 0
      %396 = vmatpush1.bf16.msra.mxu0 0
      %397 = vmatprep.subr.bf16.mxu0 0
      %398 = vmatpush1.bf16.msra.mxu0 0
      %399 = vmatprep.subr.bf16.mxu0 0
      %400 = vmatpush1.bf16.msra.mxu0 0
      %401 = vmatprep.subr.bf16.mxu0 0
      %402 = vmatpush1.bf16.msra.mxu0 0
      %403 = vmatprep.mubr.bf16.mxu0 0
      %404 = vmatmul.mubr.bf16.gmra.mrb[0].mxu0 %v362
      %v405 = vpop.f32.mrb[0].mxu0
      %v406 = vadd.f32 0.0, %v405
      %v407 = vpop.f32.mrb[0].mxu0
      %v408 = vadd.f32 0.0, %v407
      %v409 = vpop.f32.mrb[0].mxu0
      %v410 = vpop.f32.mrb[0].mxu0
      %411 = vdwg.mxu0
      %v413 = vsel %vm360, %v330, 0
      %v416 = vsel %vm364, %v331, 0
      %v419 = vsel %vm364, %v332, 0
      %421 = vmatprep.subr.bf16.mxu0 %v419
      %422 = vmatpush1.bf16.msra.mxu0 %v416
      %423 = vmatprep.subr.bf16.mxu0 0
      %424 = vmatpush1.bf16.msra.mxu0 0
      %425 = vmatprep.subr.bf16.mxu0 0
      %426 = vmatpush1.bf16.msra.mxu0 0
      %427 = vmatprep.subr.bf16.mxu0 0
      %428 = vmatpush1.bf16.msra.mxu0 0
      %429 = vmatprep.subr.bf16.mxu0 0
      %430 = vmatpush1.bf16.msra.mxu0 0
      %431 = vmatprep.subr.bf16.mxu0 0
      %432 = vmatpush1.bf16.msra.mxu0 0
      %433 = vmatprep.subr.bf16.mxu0 0
      %434 = vmatpush1.bf16.msra.mxu0 0
      %435 = vmatprep.subr.bf16.mxu0 0
      %436 = vmatpush1.bf16.msra.mxu0 0
      %437 = vmatprep.subr.bf16.mxu0 0
      %438 = vmatpush1.bf16.msra.mxu0 0
      %439 = vmatprep.subr.bf16.mxu0 0
      %440 = vmatpush1.bf16.msra.mxu0 0
      %441 = vmatprep.subr.bf16.mxu0 0
      %442 = vmatpush1.bf16.msra.mxu0 0
      %443 = vmatprep.subr.bf16.mxu0 0
      %444 = vmatpush1.bf16.msra.mxu0 0
      %445 = vmatprep.subr.bf16.mxu0 0
      %446 = vmatpush1.bf16.msra.mxu0 0
      %447 = vmatprep.subr.bf16.mxu0 0
      %448 = vmatpush1.bf16.msra.mxu0 0
      %449 = vmatprep.subr.bf16.mxu0 0
      %450 = vmatpush1.bf16.msra.mxu0 0
      %451 = vmatprep.subr.bf16.mxu0 0
      %452 = vmatpush1.bf16.msra.mxu0 0
      %453 = vmatprep.mubr.bf16.mxu0 0
      %454 = vmatmul.mubr.bf16.gmra.mrb[0].mxu0 %v413
      %v455 = vpop.f32.mrb[0].mxu0
      %v456 = vadd.f32 %v406, %v455
      %v457 = vpop.f32.mrb[0].mxu0
      %v458 = vadd.f32 %v408, %v457
      %v459 = vpop.f32.mrb[0].mxu0
      %v460 = vpop.f32.mrb[0].mxu0
      %461 = vdwg.mxu0
      %462 = vrot.lane.b32.xlu0 %v305, 15
      %v463 = vpop.permute.xlu0 %462
      %465 = vrot.lane.b32.xlu0 %v296, 15
      %v466 = vpop.permute.xlu0 %465
      %vm467 = vcmask 121856
      %v468 = vsel %vm467, %v466, %v463
      %v471 = vsel %vm467, %v463, %v466
      %vm472 = vmand %vm300, %vm303
      %v473 = vsel %vm472, 1, 0
      %v474 = vlaneseq
      %v475 = vshrl.u32 %v474, 7
      %v476 = vsub.s32 0, %v475
      %v477 = vrot.slane %v473, %v476
      %v478 = vlaneseq
      %v479 = vshrl.u32 %v478, 7
      %v480 = vsub.s32 1, %v479
      %v481 = vrot.slane %v473, %v480
      %vm482 = vcmp.eq.s32.totalorder %v477, 1
      %vm483 = vcmp.eq.s32.totalorder %v481, 1
      %v484 = vsel %vm482, %v471, 0.0
      %v485 = vsel %vm483, %v468, 0.0
      %s486 = scalar_lea.vmem %s3, 4
      %v487 = vld [vmem:[%s486] sm:$0x3]
      %v488 = vpack.c.bf16 %v484, %v484
      %v489 = vpack.c.bf16 %v485, %v485
      %v491 = vsel %vm360, %v487, 0
      %v494 = vsel %vm364, %v488, 0
      %v497 = vsel %vm364, %v489, 0
      %499 = vmatprep.subr.bf16.mxu0 %v497
      %500 = vmatpush1.bf16.msra.mxu0 %v494
      %501 = vmatprep.subr.bf16.mxu0 0
      %502 = vmatpush1.bf16.msra.mxu0 0
      %503 = vmatprep.subr.bf16.mxu0 0
      %504 = vmatpush1.bf16.msra.mxu0 0
      %505 = vmatprep.subr.bf16.mxu0 0
      %506 = vmatpush1.bf16.msra.mxu0 0
      %507 = vmatprep.subr.bf16.mxu0 0
      %508 = vmatpush1.bf16.msra.mxu0 0
      %509 = vmatprep.subr.bf16.mxu0 0
      %510 = vmatpush1.bf16.msra.mxu0 0
      %511 = vmatprep.subr.bf16.mxu0 0
      %512 = vmatpush1.bf16.msra.mxu0 0
      %513 = vmatprep.subr.bf16.mxu0 0
      %514 = vmatpush1.bf16.msra.mxu0 0
      %515 = vmatprep.subr.bf16.mxu0 0
      %516 = vmatpush1.bf16.msra.mxu0 0
      %517 = vmatprep.subr.bf16.mxu0 0
      %518 = vmatpush1.bf16.msra.mxu0 0
      %519 = vmatprep.subr.bf16.mxu0 0
      %520 = vmatpush1.bf16.msra.mxu0 0
      %521 = vmatprep.subr.bf16.mxu0 0
      %522 = vmatpush1.bf16.msra.mxu0 0
      %523 = vmatprep.subr.bf16.mxu0 0
      %524 = vmatpush1.bf16.msra.mxu0 0
      %525 = vmatprep.subr.bf16.mxu0 0
      %526 = vmatpush1.bf16.msra.mxu0 0
      %527 = vmatprep.subr.bf16.mxu0 0
      %528 = vmatpush1.bf16.msra.mxu0 0
      %529 = vmatprep.subr.bf16.mxu0 0
      %530 = vmatpush1.bf16.msra.mxu0 0
      %531 = vmatprep.mubr.bf16.mxu0 0
      %532 = vmatmul.mubr.bf16.gmra.mrb[0].mxu0 %v491
      %v533 = vpop.f32.mrb[0].mxu0
      %v534 = vadd.f32 0.0, %v533
      %v535 = vpop.f32.mrb[0].mxu0
      %v536 = vadd.f32 0.0, %v535
      %v537 = vpop.f32.mrb[0].mxu0
      %v538 = vpop.f32.mrb[0].mxu0
      %539 = vdwg.mxu0
      %v540 = vadd.f32 %v456, %v534
      %v541 = vadd.f32 %v458, %v536
      %542 = vrot.lane.b32.xlu0 %v305, 1
      %v543 = vpop.permute.xlu0 %542
      %545 = vrot.lane.b32.xlu0 %v296, 1
      %v546 = vpop.permute.xlu0 %545
      %vm547 = vcmask 7168
      %v548 = vsel %vm547, %v546, %v543
      %v551 = vsel %vm547, %v543, %v546
      %v552 = vsel %vm302, 1, 0
      %v553 = vlaneseq
      %v554 = vshrl.u32 %v553, 7
      %v555 = vsub.s32 0, %v554
      %v556 = vrot.slane %v552, %v555
      %v557 = vlaneseq
      %v558 = vshrl.u32 %v557, 7
      %v559 = vsub.s32 1, %v558
      %v560 = vrot.slane %v552, %v559
      %vm561 = vcmp.eq.s32.totalorder %v556, 1
      %vm562 = vcmp.eq.s32.totalorder %v560, 1
      %v563 = vsel %vm561, %v551, 0.0
      %v564 = vsel %vm562, %v548, 0.0
      %s565 = scalar_lea.vmem %s3, 6
      %v566 = vld [vmem:[%s565] sm:$0x3]
      %v567 = vpack.c.bf16 %v563, %v563
      %v568 = vpack.c.bf16 %v564, %v564
      %v570 = vsel %vm360, %v566, 0
      %v573 = vsel %vm364, %v567, 0
      %v576 = vsel %vm364, %v568, 0
      %578 = vmatprep.subr.bf16.mxu0 %v576
      %579 = vmatpush1.bf16.msra.mxu0 %v573
      %580 = vmatprep.subr.bf16.mxu0 0
      %581 = vmatpush1.bf16.msra.mxu0 0
      %582 = vmatprep.subr.bf16.mxu0 0
      %583 = vmatpush1.bf16.msra.mxu0 0
      %584 = vmatprep.subr.bf16.mxu0 0
      %585 = vmatpush1.bf16.msra.mxu0 0
      %586 = vmatprep.subr.bf16.mxu0 0
      %587 = vmatpush1.bf16.msra.mxu0 0
      %588 = vmatprep.subr.bf16.mxu0 0
      %589 = vmatpush1.bf16.msra.mxu0 0
      %590 = vmatprep.subr.bf16.mxu0 0
      %591 = vmatpush1.bf16.msra.mxu0 0
      %592 = vmatprep.subr.bf16.mxu0 0
      %593 = vmatpush1.bf16.msra.mxu0 0
      %594 = vmatprep.subr.bf16.mxu0 0
      %595 = vmatpush1.bf16.msra.mxu0 0
      %596 = vmatprep.subr.bf16.mxu0 0
      %597 = vmatpush1.bf16.msra.mxu0 0
      %598 = vmatprep.subr.bf16.mxu0 0
      %599 = vmatpush1.bf16.msra.mxu0 0
      %600 = vmatprep.subr.bf16.mxu0 0
      %601 = vmatpush1.bf16.msra.mxu0 0
      %602 = vmatprep.subr.bf16.mxu0 0
      %603 = vmatpush1.bf16.msra.mxu0 0
      %604 = vmatprep.subr.bf16.mxu0 0
      %605 = vmatpush1.bf16.msra.mxu0 0
      %606 = vmatprep.subr.bf16.mxu0 0
      %607 = vmatpush1.bf16.msra.mxu0 0
      %608 = vmatprep.subr.bf16.mxu0 0
      %609 = vmatpush1.bf16.msra.mxu0 0
      %610 = vmatprep.mubr.bf16.mxu0 0
      %611 = vmatmul.mubr.bf16.gmra.mrb[0].mxu0 %v570
      %v612 = vpop.f32.mrb[0].mxu0
      %v613 = vadd.f32 0.0, %v612
      %v614 = vpop.f32.mrb[0].mxu0
      %v615 = vadd.f32 0.0, %v614
      %v616 = vpop.f32.mrb[0].mxu0
      %v617 = vpop.f32.mrb[0].mxu0
      %618 = vdwg.mxu0
      %v619 = vadd.f32 %v540, %v613
      %v620 = vadd.f32 %v541, %v615
      %s621 = scalar_lea.vmem %s3, 8
      %v622 = vld [vmem:[%s621] sm:$0x3]
      %v624 = vpack.c.bf16 %v296, %v296
      %v625 = vpack.c.bf16 %v305, %v305
      %v627 = vsel %vm360, %v622, 0
      %v630 = vsel %vm364, %v624, 0
      %v633 = vsel %vm364, %v625, 0
      %635 = vmatprep.subr.bf16.mxu0 %v633
      %636 = vmatpush1.bf16.msra.mxu0 %v630
      %637 = vmatprep.subr.bf16.mxu0 0
      %638 = vmatpush1.bf16.msra.mxu0 0
      %639 = vmatprep.subr.bf16.mxu0 0
      %640 = vmatpush1.bf16.msra.mxu0 0
      %641 = vmatprep.subr.bf16.mxu0 0
      %642 = vmatpush1.bf16.msra.mxu0 0
      %643 = vmatprep.subr.bf16.mxu0 0
      %644 = vmatpush1.bf16.msra.mxu0 0
      %645 = vmatprep.subr.bf16.mxu0 0
      %646 = vmatpush1.bf16.msra.mxu0 0
      %647 = vmatprep.subr.bf16.mxu0 0
      %648 = vmatpush1.bf16.msra.mxu0 0
      %649 = vmatprep.subr.bf16.mxu0 0
      %650 = vmatpush1.bf16.msra.mxu0 0
      %651 = vmatprep.subr.bf16.mxu0 0
      %652 = vmatpush1.bf16.msra.mxu0 0
      %653 = vmatprep.subr.bf16.mxu0 0
      %654 = vmatpush1.bf16.msra.mxu0 0
      %655 = vmatprep.subr.bf16.mxu0 0
      %656 = vmatpush1.bf16.msra.mxu0 0
      %657 = vmatprep.subr.bf16.mxu0 0
      %658 = vmatpush1.bf16.msra.mxu0 0
      %659 = vmatprep.subr.bf16.mxu0 0
      %660 = vmatpush1.bf16.msra.mxu0 0
      %661 = vmatprep.subr.bf16.mxu0 0
      %662 = vmatpush1.bf16.msra.mxu0 0
      %663 = vmatprep.subr.bf16.mxu0 0
      %664 = vmatpush1.bf16.msra.mxu0 0
      %665 = vmatprep.subr.bf16.mxu0 0
      %666 = vmatpush1.bf16.msra.mxu0 0
      %667 = vmatprep.mubr.bf16.mxu0 0
      %668 = vmatmul.mubr.bf16.gmra.mrb[0].mxu0 %v627
      %v669 = vpop.f32.mrb[0].mxu0
      %v670 = vadd.f32 0.0, %v669
      %v671 = vpop.f32.mrb[0].mxu0
      %v672 = vadd.f32 0.0, %v671
      %v673 = vpop.f32.mrb[0].mxu0
      %v674 = vpop.f32.mrb[0].mxu0
      %675 = vdwg.mxu0
      %v676 = vadd.f32 %v619, %v670
      %v677 = vadd.f32 %v620, %v672
      %678 = vrot.lane.b32.xlu0 %v296, 127
      %v679 = vpop.permute.xlu0 %678
      %680 = vrot.lane.b32.xlu0 %v305, 127
      %v681 = vpop.permute.xlu0 %680
      %vm682 = vcmask 1039360
      %v683 = vsel %vm682, %v679, %v681
      %v687 = vsel %vm682, %v681, %v679
      %v688 = vsel %vm303, 1, 0
      %v689 = vlaneseq
      %v690 = vshrl.u32 %v689, 7
      %v691 = vsub.s32 0, %v690
      %v692 = vrot.slane %v688, %v691
      %v693 = vlaneseq
      %v694 = vshrl.u32 %v693, 7
      %v695 = vsub.s32 1, %v694
      %v696 = vrot.slane %v688, %v695
      %vm697 = vcmp.eq.s32.totalorder %v692, 1
      %vm698 = vcmp.eq.s32.totalorder %v696, 1
      %v699 = vsel %vm697, %v683, 0.0
      %v700 = vsel %vm698, %v687, 0.0
      %s701 = scalar_lea.vmem %s3, 10
      %v702 = vld [vmem:[%s701] sm:$0x3]
      %v703 = vpack.c.bf16 %v699, %v699
      %v704 = vpack.c.bf16 %v700, %v700
      %v706 = vsel %vm360, %v702, 0
      %v709 = vsel %vm364, %v703, 0
      %v712 = vsel %vm364, %v704, 0
      %714 = vmatprep.subr.bf16.mxu0 %v712
      %715 = vmatpush1.bf16.msra.mxu0 %v709
      %716 = vmatprep.subr.bf16.mxu0 0
      %717 = vmatpush1.bf16.msra.mxu0 0
      %718 = vmatprep.subr.bf16.mxu0 0
      %719 = vmatpush1.bf16.msra.mxu0 0
      %720 = vmatprep.subr.bf16.mxu0 0
      %721 = vmatpush1.bf16.msra.mxu0 0
      %722 = vmatprep.subr.bf16.mxu0 0
      %723 = vmatpush1.bf16.msra.mxu0 0
      %724 = vmatprep.subr.bf16.mxu0 0
      %725 = vmatpush1.bf16.msra.mxu0 0
      %726 = vmatprep.subr.bf16.mxu0 0
      %727 = vmatpush1.bf16.msra.mxu0 0
      %728 = vmatprep.subr.bf16.mxu0 0
      %729 = vmatpush1.bf16.msra.mxu0 0
      %730 = vmatprep.subr.bf16.mxu0 0
      %731 = vmatpush1.bf16.msra.mxu0 0
      %732 = vmatprep.subr.bf16.mxu0 0
      %733 = vmatpush1.bf16.msra.mxu0 0
      %734 = vmatprep.subr.bf16.mxu0 0
      %735 = vmatpush1.bf16.msra.mxu0 0
      %736 = vmatprep.subr.bf16.mxu0 0
      %737 = vmatpush1.bf16.msra.mxu0 0
      %738 = vmatprep.subr.bf16.mxu0 0
      %739 = vmatpush1.bf16.msra.mxu0 0
      %740 = vmatprep.subr.bf16.mxu0 0
      %741 = vmatpush1.bf16.msra.mxu0 0
      %742 = vmatprep.subr.bf16.mxu0 0
      %743 = vmatpush1.bf16.msra.mxu0 0
      %744 = vmatprep.subr.bf16.mxu0 0
      %745 = vmatpush1.bf16.msra.mxu0 0
      %746 = vmatprep.mubr.bf16.mxu0 0
      %747 = vmatmul.mubr.bf16.gmra.mrb[0].mxu0 %v706
      %v748 = vpop.f32.mrb[0].mxu0
      %v749 = vadd.f32 0.0, %v748
      %v750 = vpop.f32.mrb[0].mxu0
      %v751 = vadd.f32 0.0, %v750
      %v752 = vpop.f32.mrb[0].mxu0
      %v753 = vpop.f32.mrb[0].mxu0
      %754 = vdwg.mxu0
      %v755 = vadd.f32 %v676, %v749
      %v756 = vadd.f32 %v677, %v751
      %757 = vrot.lane.b32.xlu0 %v296, 113
      %v758 = vpop.permute.xlu0 %757
      %759 = vrot.lane.b32.xlu0 %v305, 113
      %v760 = vpop.permute.xlu0 %759
      %vm761 = vcmask 924672
      %v762 = vsel %vm761, %v758, %v760
      %v766 = vsel %vm761, %v760, %v758
      %vm767 = vmand %vm301, %vm302
      %v768 = vsel %vm767, 1, 0
      %v769 = vlaneseq
      %v770 = vshrl.u32 %v769, 7
      %v771 = vsub.s32 0, %v770
      %v772 = vrot.slane %v768, %v771
      %v773 = vlaneseq
      %v774 = vshrl.u32 %v773, 7
      %v775 = vsub.s32 1, %v774
      %v776 = vrot.slane %v768, %v775
      %vm777 = vcmp.eq.s32.totalorder %v772, 1
      %vm778 = vcmp.eq.s32.totalorder %v776, 1
      %v779 = vsel %vm777, %v762, 0.0
      %v780 = vsel %vm778, %v766, 0.0
      %s781 = scalar_lea.vmem %s3, 12
      %v782 = vld [vmem:[%s781] sm:$0x3]
      %v783 = vpack.c.bf16 %v779, %v779
      %v784 = vpack.c.bf16 %v780, %v780
      %v786 = vsel %vm360, %v782, 0
      %v789 = vsel %vm364, %v783, 0
      %v792 = vsel %vm364, %v784, 0
      %794 = vmatprep.subr.bf16.mxu0 %v792
      %795 = vmatpush1.bf16.msra.mxu0 %v789
      %796 = vmatprep.subr.bf16.mxu0 0
      %797 = vmatpush1.bf16.msra.mxu0 0
      %798 = vmatprep.subr.bf16.mxu0 0
      %799 = vmatpush1.bf16.msra.mxu0 0
      %800 = vmatprep.subr.bf16.mxu0 0
      %801 = vmatpush1.bf16.msra.mxu0 0
      %802 = vmatprep.subr.bf16.mxu0 0
      %803 = vmatpush1.bf16.msra.mxu0 0
      %804 = vmatprep.subr.bf16.mxu0 0
      %805 = vmatpush1.bf16.msra.mxu0 0
      %806 = vmatprep.subr.bf16.mxu0 0
      %807 = vmatpush1.bf16.msra.mxu0 0
      %808 = vmatprep.subr.bf16.mxu0 0
      %809 = vmatpush1.bf16.msra.mxu0 0
      %810 = vmatprep.subr.bf16.mxu0 0
      %811 = vmatpush1.bf16.msra.mxu0 0
      %812 = vmatprep.subr.bf16.mxu0 0
      %813 = vmatpush1.bf16.msra.mxu0 0
      %814 = vmatprep.subr.bf16.mxu0 0
      %815 = vmatpush1.bf16.msra.mxu0 0
      %816 = vmatprep.subr.bf16.mxu0 0
      %817 = vmatpush1.bf16.msra.mxu0 0
      %818 = vmatprep.subr.bf16.mxu0 0
      %819 = vmatpush1.bf16.msra.mxu0 0
      %820 = vmatprep.subr.bf16.mxu0 0
      %821 = vmatpush1.bf16.msra.mxu0 0
      %822 = vmatprep.subr.bf16.mxu0 0
      %823 = vmatpush1.bf16.msra.mxu0 0
      %824 = vmatprep.subr.bf16.mxu0 0
      %825 = vmatpush1.bf16.msra.mxu0 0
      %826 = vmatprep.mubr.bf16.mxu0 0
      %827 = vmatmul.mubr.bf16.gmra.mrb[0].mxu0 %v786
      %v828 = vpop.f32.mrb[0].mxu0
      %v829 = vadd.f32 0.0, %v828
      %v830 = vpop.f32.mrb[0].mxu0
      %v831 = vadd.f32 0.0, %v830
      %v832 = vpop.f32.mrb[0].mxu0
      %v833 = vpop.f32.mrb[0].mxu0
      %834 = vdwg.mxu0
      %v835 = vadd.f32 %v755, %v829
      %v836 = vadd.f32 %v756, %v831
      %837 = vrot.lane.b32.xlu0 %v296, 112
      %v838 = vpop.permute.xlu0 %837
      %839 = vrot.lane.b32.xlu0 %v305, 112
      %v840 = vpop.permute.xlu0 %839
      %vm841 = vcmask 916480
      %v842 = vsel %vm841, %v838, %v840
      %v846 = vsel %vm841, %v840, %v838
      %v847 = vsel %vm301, 1, 0
      %v848 = vlaneseq
      %v849 = vshrl.u32 %v848, 7
      %v850 = vsub.s32 0, %v849
      %v851 = vrot.slane %v847, %v850
      %v852 = vlaneseq
      %v853 = vshrl.u32 %v852, 7
      %v854 = vsub.s32 1, %v853
      %v855 = vrot.slane %v847, %v854
      %vm856 = vcmp.eq.s32.totalorder %v851, 1
      %vm857 = vcmp.eq.s32.totalorder %v855, 1
      %v858 = vsel %vm856, %v842, 0.0
      %v859 = vsel %vm857, %v846, 0.0
      %s860 = scalar_lea.vmem %s3, 14
      %v861 = vld [vmem:[%s860] sm:$0x3]
      %v862 = vpack.c.bf16 %v858, %v858
      %v863 = vpack.c.bf16 %v859, %v859
      %v865 = vsel %vm360, %v861, 0
      %v868 = vsel %vm364, %v862, 0
      %v871 = vsel %vm364, %v863, 0
      %873 = vmatprep.subr.bf16.mxu0 %v871
      %874 = vmatpush1.bf16.msra.mxu0 %v868
      %875 = vmatprep.subr.bf16.mxu0 0
      %876 = vmatpush1.bf16.msra.mxu0 0
      %877 = vmatprep.subr.bf16.mxu0 0
      %878 = vmatpush1.bf16.msra.mxu0 0
      %879 = vmatprep.subr.bf16.mxu0 0
      %880 = vmatpush1.bf16.msra.mxu0 0
      %881 = vmatprep.subr.bf16.mxu0 0
      %882 = vmatpush1.bf16.msra.mxu0 0
      %883 = vmatprep.subr.bf16.mxu0 0
      %884 = vmatpush1.bf16.msra.mxu0 0
      %885 = vmatprep.subr.bf16.mxu0 0
      %886 = vmatpush1.bf16.msra.mxu0 0
      %887 = vmatprep.subr.bf16.mxu0 0
      %888 = vmatpush1.bf16.msra.mxu0 0
      %889 = vmatprep.subr.bf16.mxu0 0
      %890 = vmatpush1.bf16.msra.mxu0 0
      %891 = vmatprep.subr.bf16.mxu0 0
      %892 = vmatpush1.bf16.msra.mxu0 0
      %893 = vmatprep.subr.bf16.mxu0 0
      %894 = vmatpush1.bf16.msra.mxu0 0
      %895 = vmatprep.subr.bf16.mxu0 0
      %896 = vmatpush1.bf16.msra.mxu0 0
      %897 = vmatprep.subr.bf16.mxu0 0
      %898 = vmatpush1.bf16.msra.mxu0 0
      %899 = vmatprep.subr.bf16.mxu0 0
      %900 = vmatpush1.bf16.msra.mxu0 0
      %901 = vmatprep.subr.bf16.mxu0 0
      %902 = vmatpush1.bf16.msra.mxu0 0
      %903 = vmatprep.subr.bf16.mxu0 0
      %904 = vmatpush1.bf16.msra.mxu0 0
      %905 = vmatprep.mubr.bf16.mxu0 0
      %906 = vmatmul.mubr.bf16.gmra.mrb[0].mxu0 %v865
      %v907 = vpop.f32.mrb[0].mxu0
      %v908 = vadd.f32 0.0, %v907
      %v909 = vpop.f32.mrb[0].mxu0
      %v910 = vadd.f32 0.0, %v909
      %v911 = vpop.f32.mrb[0].mxu0
      %v912 = vpop.f32.mrb[0].mxu0
      %913 = vdwg.mxu0
      %v914 = vadd.f32 %v835, %v908
      %v915 = vadd.f32 %v836, %v910
      %916 = vrot.lane.b32.xlu0 %v296, 111
      %v917 = vpop.permute.xlu0 %916
      %918 = vrot.lane.b32.xlu0 %v305, 111
      %v919 = vpop.permute.xlu0 %918
      %vm920 = vcmask 908288
      %v921 = vsel %vm920, %v917, %v919
      %v925 = vsel %vm920, %v919, %v917
      %vm926 = vmand %vm301, %vm303
      %v927 = vsel %vm926, 1, 0
      %v928 = vlaneseq
      %v929 = vshrl.u32 %v928, 7
      %v930 = vsub.s32 0, %v929
      %v931 = vrot.slane %v927, %v930
      %v932 = vlaneseq
      %v933 = vshrl.u32 %v932, 7
      %v934 = vsub.s32 1, %v933
      %v935 = vrot.slane %v927, %v934
      %vm936 = vcmp.eq.s32.totalorder %v931, 1
      %vm937 = vcmp.eq.s32.totalorder %v935, 1
      %v938 = vsel %vm936, %v921, 0.0
      %v939 = vsel %vm937, %v925, 0.0
      %s940 = scalar_lea.vmem %s3, 16
      %v941 = vld [vmem:[%s940] sm:$0x3]
      %v942 = vpack.c.bf16 %v938, %v938
      %v943 = vpack.c.bf16 %v939, %v939
      %v945 = vsel %vm360, %v941, 0
      %v948 = vsel %vm364, %v942, 0
      %v951 = vsel %vm364, %v943, 0
      %953 = vmatprep.subr.bf16.mxu0 %v951
      %954 = vmatpush1.bf16.msra.mxu0 %v948
      %955 = vmatprep.subr.bf16.mxu0 0
      %956 = vmatpush1.bf16.msra.mxu0 0
      %957 = vmatprep.subr.bf16.mxu0 0
      %958 = vmatpush1.bf16.msra.mxu0 0
      %959 = vmatprep.subr.bf16.mxu0 0
      %960 = vmatpush1.bf16.msra.mxu0 0
      %961 = vmatprep.subr.bf16.mxu0 0
      %962 = vmatpush1.bf16.msra.mxu0 0
      %963 = vmatprep.subr.bf16.mxu0 0
      %964 = vmatpush1.bf16.msra.mxu0 0
      %965 = vmatprep.subr.bf16.mxu0 0
      %966 = vmatpush1.bf16.msra.mxu0 0
      %967 = vmatprep.subr.bf16.mxu0 0
      %968 = vmatpush1.bf16.msra.mxu0 0
      %969 = vmatprep.subr.bf16.mxu0 0
      %970 = vmatpush1.bf16.msra.mxu0 0
      %971 = vmatprep.subr.bf16.mxu0 0
      %972 = vmatpush1.bf16.msra.mxu0 0
      %973 = vmatprep.subr.bf16.mxu0 0
      %974 = vmatpush1.bf16.msra.mxu0 0
      %975 = vmatprep.subr.bf16.mxu0 0
      %976 = vmatpush1.bf16.msra.mxu0 0
      %977 = vmatprep.subr.bf16.mxu0 0
      %978 = vmatpush1.bf16.msra.mxu0 0
      %979 = vmatprep.subr.bf16.mxu0 0
      %980 = vmatpush1.bf16.msra.mxu0 0
      %981 = vmatprep.subr.bf16.mxu0 0
      %982 = vmatpush1.bf16.msra.mxu0 0
      %983 = vmatprep.subr.bf16.mxu0 0
      %984 = vmatpush1.bf16.msra.mxu0 0
      %985 = vmatprep.mubr.bf16.mxu0 0
      %986 = vmatmul.mubr.bf16.gmra.mrb[0].mxu0 %v945
      %v987 = vpop.f32.mrb[0].mxu0
      %v988 = vadd.f32 0.0, %v987
      %v989 = vpop.f32.mrb[0].mxu0
      %v990 = vadd.f32 0.0, %v989
      %v991 = vpop.f32.mrb[0].mxu0
      %v992 = vpop.f32.mrb[0].mxu0
      %993 = vdwg.mxu0
      %v994 = vadd.f32 %v914, %v988
      %v995 = vadd.f32 %v915, %v990
      %v998 = vcombine.low %v994, %v995
      %1000 = vst [vmem:[%s260] sm:$0xff] %v998
      %vm1001 = vcmask 1043456
      %v1002 = vsel %vm1001, %v994, 0.0
      %v1003 = vsel %vm1001, %v995, 0.0
      %v1004 = vadd.f32 %v1002, %v1003
      %1005 = vadd.xlane.f32.xlu0 %v1004
      %v1006 = vpop.xlane.xlu0 %1005
      %vm1007 = vcmask 3072
      %1008 = vst.msk [vmem:[%s265] sm:$0xf] %vm1007, %v1006
      %v1009 = vmul.f32 %v994, %v994
      %v1010 = vmul.f32 %v995, %v995
      %v1011 = vsel %vm1001, %v1009, 0.0
      %v1012 = vsel %vm1001, %v1010, 0.0
      %v1013 = vadd.f32 %v1011, %v1012
      %1014 = vadd.xlane.f32.xlu0 %v1013
      %v1015 = vpop.xlane.xlu0 %1014
      %vm1016 = vcmask 11272
      %1017 = vst.msk [vmem:[%s265] sm:$0xf] %vm1016, %v1015
      %s1018 = smul.u32 2, %s18
      %p1019 = scmp.lt.s32.totalorder %s1018, 3
      %s1020 = scalar_select %p1019, %s1018, 3
      %s1021 = smul.addr %s1020, 4
      %s1022 = scalar_lea.vmem %s5, %s1021
      %p1023 = scmp.lt.s32.totalorder %s18, 1
      %s1024 = scalar_select %p1023, %s18, 1
      %s1025 = smul.addr %s1024, 4
      %s1026 = scalar_lea.vmem %s6, %s1025
      // Predicated region
      $region41: #{residual_block_pallas.3} parent=39 // pred_check
        %p1027 = pneg %p146
      $region42: #{residual_block_pallas.3} parent=39 // pred_check_branch
        %1029 = sbr.rel (%p1027) target = $region44
      $region43: #{residual_block_pallas.3} parent=39 // pred_region
        %s1030 = smul.u32 2, %s18
      $region44: #{residual_block_pallas.3} parent=39 // pred_fallthru
        _
      // Predicated region
      $region45: #{residual_block_pallas.3} parent=39 // pred_check
        %p1031 = pneg %p172
      $region46: #{residual_block_pallas.3} parent=39 // pred_check_branch
        %1033 = sbr.rel (%p1031) target = $region48
      $region47: #{residual_block_pallas.3} parent=39 // pred_region
        _
      $region48: #{residual_block_pallas.3} parent=39 // pred_fallthru
        _
    $region40: #{residual_block_pallas.3} parent=5 // pred_fallthru
      _
    %p1034 = scmp.le.s32.totalorder 2, %s13
    // Predicated region
    $region49: #{residual_block_pallas.3} parent=5 // pred_check
      %p1035 = pneg %p1034
    $region50: #{residual_block_pallas.3} parent=5 // pred_check_branch
      %1037 = sbr.rel (%p1035) target = $region52
    $region51: #{residual_block_pallas.3} parent=5 // pred_region
      %s1038 = ssub.s32 %s13, 2
      // Predicated region
      $region53: #{residual_block_pallas.3} parent=51 // pred_check
        %p1039 = pneg %p152
      $region54: #{residual_block_pallas.3} parent=51 // pred_check_branch
        %1041 = sbr.rel (%p1039) target = $region56
      $region55: #{residual_block_pallas.3} parent=51 // pred_region
        %s1042 = smul.u32 2, %s19
        %p1043 = scmp.lt.s32.totalorder %s1042, 3
        %s1044 = scalar_select %p1043, %s1042, 3
        %s1045 = smul.addr %s1044, 4
        %s1046 = scalar_lea.vmem %s5, %s1045
      $region56: #{residual_block_pallas.3} parent=51 // pred_fallthru
        _
      // Predicated region
      $region57: #{residual_block_pallas.3} parent=51 // pred_check
        %p1047 = pneg %p178
      $region58: #{residual_block_pallas.3} parent=51 // pred_check_branch
        %1049 = sbr.rel (%p1047) target = $region60
      $region59: #{residual_block_pallas.3} parent=51 // pred_region
        %p1050 = scmp.lt.s32.totalorder %s19, 1
        %s1051 = scalar_select %p1050, %s19, 1
        %s1052 = smul.addr %s1051, 4
        %s1053 = scalar_lea.vmem %s6, %s1052
      $region60: #{residual_block_pallas.3} parent=51 // pred_fallthru
        _
    $region52: #{residual_block_pallas.3} parent=5 // pred_fallthru
      _
  $region6: #{residual_block_pallas.3} parent=0 // loop_footer
    %s17 = sadd.s32 1, %s13
  $region7: #{residual_block_pallas.3} parent=0 // loop_footer_branch
    %12 = sbr.rel target = $region3
  $region8: #{residual_block_pallas.3} parent=0 // loop_exit
    _

</llo_original>
